<compile_context>
chip_gen: v7x
topology: tpu7x:2x2x1
jax: 0.10.0
libtpu: 0.0.40
codegen_flags: <defaults>
</compile_context>

<pallas_src>
import functools

import jax
import jax.numpy as jnp
from jax import lax
from jax.experimental import pallas as pl
from jax.experimental.pallas import tpu as pltpu


def _round_up(x, m):
    return (x + m - 1) // m * m


def _gelu(x, approx):
    if approx:
        # tanh approximation -> EUP slot (opt-in; deviates slightly from PyTorch's
        # default exact GELU).
        return jax.nn.gelu(x, approximate=True)
    # PyTorch nn.GELU default (approximate='none'): 0.5*x*(1+erf(x/sqrt(2)))
    return 0.5 * x * (1.0 + lax.erf(x * (1.0 / jnp.sqrt(2.0).astype(x.dtype))))


def _residual_conv_block_kernel(
    x_ref,     # (Bt, Cin, HW)        input images (channels-first, spatial on lanes)
    w1_ref,    # im2col: (Cout_p, 9*Cin_p)   | tap path: (9, Cout_p, Cin_p)
    b1_ref,    # (Cout_p, 1)
    w2_ref,    # im2col: (Cout_p, 9*Cout_p)  | tap path: (9, Cout_p, Cout_p)
    b2_ref,    # (Cout_p, 1)
    out_ref,   # (Bt, Cout, HW)       lane-dense output
    *scratch,  # im2col path only: shared VMEM (9*max(Cin_p,Cout_p), Bt*HW)
    H, W, Cin, Cout, Cin_p, Cout_p, Bt, is_res, same_channels,
    use_im2col, gelu_approx, eps,
):
    HW = H * W
    L = Bt * HW
    col_ref = scratch[0] if use_im2col else None

    # ---- border masks: built once, shared by both convs --------------------------
    # Float index trick (exact while Bt*H*W < 2^24; asserted in the wrapper).
    flat = lax.broadcasted_iota(jnp.int32, (1, L), 1).astype(jnp.float32)
    img = jnp.floor(flat / float(HW))
    local = flat - img * float(HW)
    row = jnp.floor(local / float(W))
    col = local - row * float(W)

    offsets = tuple((di, dj) for di in (-1, 0, 1) for dj in (-1, 0, 1))
    masks = []
    for di, dj in offsets:
        conds = []
        if di == -1:
            conds.append(row >= 1.0)
        if di == 1:
            conds.append(row <= float(H - 2))
        if dj == -1:
            conds.append(col >= 1.0)
        if dj == 1:
            conds.append(col <= float(W - 2))
        m = None
        for c in conds:
            m = c if m is None else (m & c)
        masks.append(m)        # None for the centre tap -> no select at all

    def shift_mask(src, tap):
        # src: (cp, L).  Shift = lane rotation (XLU); the conv's implicit zero
        # padding is the hoisted border mask.  Cross-image wrap positions produced
        # by the rotation are exactly the masked border positions, so a single roll
        # over the concatenated Bt*HW lane axis is correct.
        di, dj = offsets[tap]
        off = di * W + dj
        shifted = pltpu.roll(src, (-off) % L, 1) if off != 0 else src
        m = masks[tap]
        return shifted if m is None else jnp.where(m, shifted, 0.0)

    def conv(src, cp, w_ref, b_ref):
        # src: (cp, L) f32, channel-padded (padded rows are zero).
        if use_im2col:
            # One fused-K MXU matmul (K = 9*cp); im2col built in the SHARED scratch.
            for tap in range(9):
                col_ref[tap * cp:(tap + 1) * cp, :] = (
                    shift_mask(src, tap).astype(col_ref.dtype))
            acc = jnp.dot(w_ref[...], col_ref[:9 * cp, :],
                          preferred_element_type=jnp.float32)
        else:
            # 9 accumulating matmuls, no im2col scratch (large-C / v7x path).
            acc = None
            for tap in range(9):
                part = jnp.dot(w_ref[tap],
                               shift_mask(src, tap).astype(w_ref.dtype),
                               preferred_element_type=jnp.float32)
                acc = part if acc is None else acc + part
        return acc + b_ref[...]

    def norm_gelu(acc):
        # acc: (Cout_p, L).  InstanceNorm2d (no affine): per-image, per-channel
        # stats over each HW lane segment.  Padded rows stay zero (eps > 0).
        outs = []
        for bt in range(Bt):
            seg = acc[:, bt * HW:(bt + 1) * HW]
            mean = jnp.mean(seg, axis=-1, keepdims=True)
            var = jnp.mean(jnp.square(seg - mean), axis=-1, keepdims=True)
            y = (seg - mean) * lax.rsqrt(var + eps)
            outs.append(_gelu(y, gelu_approx))
        return outs[0] if Bt == 1 else jnp.concatenate(outs, axis=1)

    # ---- assemble (Cin_p, Bt*HW) channels-first, lane-dense input -----------------
    x_imgs = [x_ref[bt].astype(jnp.float32) for bt in range(Bt)]
    xp = x_imgs[0] if Bt == 1 else jnp.concatenate(x_imgs, axis=1)     # (Cin, L)
    if Cin_p > Cin:
        xp = jnp.concatenate(
            [xp, jnp.zeros((Cin_p - Cin, L), jnp.float32)], axis=0)    # (Cin_p, L)

    # conv1 -> IN -> GELU, conv2 -> IN -> GELU (xp/x1 are not kept live past their
    # consumers; the residual re-reads x_ref / the scratch's centre tap below).
    x1 = norm_gelu(conv(xp, Cin_p, w1_ref, b1_ref))                    # (Cout_p, L)
    x2 = norm_gelu(conv(x1, Cout_p, w2_ref, b2_ref))                   # (Cout_p, L)

    for bt in range(Bt):
        seg = slice(bt * HW, (bt + 1) * HW)
        y = x2[:Cout, seg]
        if is_res:
            if same_channels:
                res = x_ref[bt].astype(jnp.float32)        # re-read input block
            elif use_im2col:
                # centre tap (tap 4) of conv2's im2col holds x1 verbatim
                res = col_ref[4 * Cout_p:4 * Cout_p + Cout, seg].astype(jnp.float32)
            else:
                res = x1[:Cout, seg]
            y = (res + y) / 1.414
        out_ref[bt] = y.astype(out_ref.dtype)


def _pack_weight_flat(w_hwio, cin_p, cout_p):
    # (3,3,Ci,Co) HWIO -> (Cout_p, 9*Cin_p); column = tap*Cin_p + c, tap = ki*3+kj,
    # matching the im2col row order in the kernel.
    kh, kw, ci, co = w_hwio.shape
    wt = jnp.transpose(w_hwio, (3, 0, 1, 2)).astype(jnp.float32)       # (Co,3,3,Ci)
    wt = jnp.pad(wt, ((0, cout_p - co), (0, 0), (0, 0), (0, cin_p - ci)))
    return wt.reshape(cout_p, kh * kw * cin_p)


def _pack_weight_taps(w_hwio, cin_p, cout_p):
    # (3,3,Ci,Co) HWIO -> (9, Cout_p, Cin_p) for the per-tap accumulating matmuls.
    kh, kw, ci, co = w_hwio.shape
    wt = jnp.transpose(w_hwio, (3, 0, 1, 2)).astype(jnp.float32)
    wt = jnp.pad(wt, ((0, cout_p - co), (0, 0), (0, 0), (0, cin_p - ci)))
    return jnp.transpose(wt.reshape(cout_p, kh * kw, cin_p), (1, 0, 2))


def _choose_bt(B, HW, cmax_p, itemsize):
    """Largest per-grid-step batch tile that keeps >=2 grid steps (so both v7x
    TensorCores get work), a modest lane width and a modest im2col footprint."""
    best = 1
    for bt in range(1, B + 1):
        if B % bt != 0:
            continue
        if B >= 2 and B // bt < 2:
            continue                                   # keep both TCs busy on v7x
        if bt * HW > 4096:
            continue                                   # lane-width cap
        if 9 * cmax_p * bt * HW * itemsize > (12 << 20):
            continue                                   # im2col footprint cap
        best = bt
    return best


def _vmem_limit_bytes(Bt, HW, Cin, Cout, Cin_p, Cout_p, use_im2col, itemsize):
    L = Bt * HW
    cmax_p = max(Cin_p, Cout_p)
    col = 9 * cmax_p * L * itemsize if use_im2col else 0
    blocks = 2 * 4 * Bt * HW * (Cin + Cout)            # double-buffered in/out blocks
    weights = 2 * itemsize * 9 * Cout_p * (Cin_p + Cout_p) + 2 * 4 * 2 * Cout_p
    temps = 6 * 4 * cmax_p * L                         # xp/x1/x2/dot temps + masks
    need = int(1.25 * (col + blocks + weights + temps)) + (1 << 20)
    try:                                               # per-generation ceiling
        cap = int(getattr(pltpu.get_tpu_info(), "vmem_capacity_bytes", 64 << 20))
    except Exception:
        cap = 64 << 20                                 # v7x-safe fallback
    ceiling = max(32 << 20, int(cap * 85 / 100))
    return min(ceiling, max(32 << 20, need))


def residual_conv_block(x_nchw, w1, b1, w2, b2, *, is_res=False,
                        mxu_dtype=jnp.float32, gelu_approx=False,
                        batch_tile=None, tap_matmul=None, eps=1e-5):
    """x_nchw: (B, Cin, H, W). Weights in HWIO: w1 (3,3,Cin,Cout), w2 (3,3,Cout,Cout).

    Returns (B, Cout, H, W) float32 (PyTorch NCHW convention).
    mxu_dtype=jnp.bfloat16 speeds up the MXU on v6e/v7x (f32 accumulation kept) but
    loosens accuracy vs. the f32 reference.  tap_matmul=True selects the scratch-free
    9-accumulating-matmul path (auto-selected when the im2col buffer would be large).
    """
    B, Cin, H, W = x_nchw.shape
    Cout = w1.shape[-1]
    HW = H * W
    itemsize = jnp.dtype(mxu_dtype).itemsize
    # bf16 packs two rows per sublane: pad channels to 16 so every tap write /
    # weight tile is a full packed-sublane chunk; f32 keeps the usual 8.
    pad_mult = max(8, 32 // itemsize)
    Cin_p = _round_up(Cin, pad_mult)
    Cout_p = _round_up(Cout, pad_mult)
    Cmax_p = max(Cin_p, Cout_p)
    same_channels = (Cin == Cout)

    Bt = int(batch_tile) if batch_tile is not None else _choose_bt(B, HW, Cmax_p, itemsize)
    assert B % Bt == 0, "batch_tile must divide the batch"
    L = Bt * HW
    assert L < (1 << 24), "float row/col index trick needs Bt*H*W < 2^24"

    if tap_matmul is None:
        use_im2col = 9 * Cmax_p * L * itemsize <= (16 << 20)
    else:
        use_im2col = not tap_matmul

    # Free (no data movement) reshape: NCHW -> (B, C, H*W). No transposes, no HBM pad.
    x_flat = x_nchw.reshape(B, Cin, HW)

    if use_im2col:
        w1_p = _pack_weight_flat(w1, Cin_p, Cout_p).astype(mxu_dtype)
        w2_p = _pack_weight_flat(w2, Cout_p, Cout_p).astype(mxu_dtype)
        w1_spec = pl.BlockSpec((Cout_p, 9 * Cin_p), lambda b: (0, 0))
        w2_spec = pl.BlockSpec((Cout_p, 9 * Cout_p), lambda b: (0, 0))
        scratch_shapes = [pltpu.VMEM((9 * Cmax_p, L), mxu_dtype)]   # shared by both convs
    else:
        w1_p = _pack_weight_taps(w1, Cin_p, Cout_p).astype(mxu_dtype)
        w2_p = _pack_weight_taps(w2, Cout_p, Cout_p).astype(mxu_dtype)
        w1_spec = pl.BlockSpec((9, Cout_p, Cin_p), lambda b: (0, 0, 0))
        w2_spec = pl.BlockSpec((9, Cout_p, Cout_p), lambda b: (0, 0, 0))
        scratch_shapes = []

    b1_p = jnp.pad(b1.astype(jnp.float32).reshape(Cout, 1), ((0, Cout_p - Cout), (0, 0)))
    b2_p = jnp.pad(b2.astype(jnp.float32).reshape(Cout, 1), ((0, Cout_p - Cout), (0, 0)))

    kernel = functools.partial(
        _residual_conv_block_kernel,
        H=H, W=W, Cin=Cin, Cout=Cout, Cin_p=Cin_p, Cout_p=Cout_p, Bt=Bt,
        is_res=is_res, same_channels=same_channels,
        use_im2col=use_im2col, gelu_approx=gelu_approx, eps=eps,
    )

    flops = int(B * HW * (2 * 9 * Cin_p * Cout_p + 2 * 9 * Cout_p * Cout_p
                          + 20 * Cout_p))
    transcendentals = int(2 * B * HW * Cout_p)
    bytes_accessed = int(4 * (x_flat.size + B * Cout * HW + b1_p.size + b2_p.size)
                         + itemsize * (w1_p.size + w2_p.size))

    out_flat = pl.pallas_call(
        kernel,
        out_shape=jax.ShapeDtypeStruct((B, Cout, HW), jnp.float32),
        grid_spec=pltpu.PrefetchScalarGridSpec(
            num_scalar_prefetch=0,
            grid=(B // Bt,),
            in_specs=[
                pl.BlockSpec((Bt, Cin, HW), lambda b: (b, 0, 0)),
                w1_spec,
                pl.BlockSpec((Cout_p, 1), lambda b: (0, 0)),
                w2_spec,
                pl.BlockSpec((Cout_p, 1), lambda b: (0, 0)),
            ],
            out_specs=pl.BlockSpec((Bt, Cout, HW), lambda b: (b, 0, 0)),
            scratch_shapes=scratch_shapes,
        ),
        compiler_params=pltpu.CompilerParams(
            dimension_semantics=("parallel",),          # megacore shards batch steps
            vmem_limit_bytes=_vmem_limit_bytes(
                Bt, HW, Cin, Cout, Cin_p, Cout_p, use_im2col, itemsize),
        ),
        cost_estimate=pl.CostEstimate(
            flops=flops, transcendentals=transcendentals,
            bytes_accessed=bytes_accessed),
    )(x_flat, w1_p, b1_p, w2_p, b2_p)

    # TODO(synk): for images where even Bt=1 blows v7x's 64 MiB VMEM, add an H-tiled
    # grid axis with a 1-row halo and a two-pass InstanceNorm.

    # Free reshape back to NCHW (kernel output is already channels-first, lane-dense).
    return out_flat.reshape(B, Cout, H, W)


def _reference(x_nchw, w1, b1, w2, b2, *, is_res, eps=1e-5):
    """Pure-JAX reference (lax.conv) mirroring the PyTorch forward."""
    def conv_in_gelu(x, w, b):
        w_oihw = jnp.transpose(w, (3, 2, 0, 1))
        y = lax.conv_general_dilated(
            x, w_oihw, window_strides=(1, 1), padding=((1, 1), (1, 1)),
            dimension_numbers=("NCHW", "OIHW", "NCHW"),
        ) + b[None, :, None, None]
        mean = jnp.mean(y, axis=(2, 3), keepdims=True)
        var = jnp.mean(jnp.square(y - mean), axis=(2, 3), keepdims=True)
        yn = (y - mean) * lax.rsqrt(var + eps)
        return 0.5 * yn * (1.0 + lax.erf(yn / jnp.sqrt(2.0)))

    x1 = conv_in_gelu(x_nchw, w1, b1)
    x2 = conv_in_gelu(x1, w2, b2)
    if is_res:
        same = x_nchw.shape[1] == w1.shape[-1]
        res = x_nchw if same else x1
        return (res + x2) / 1.414
    return x2


if __name__ == "__main__":
    key = jax.random.PRNGKey(0)

    def make_case(k, B, Cin, Cout, H, W):
        kx, kw1, kb1, kw2, kb2 = jax.random.split(k, 5)
        x = jax.random.normal(kx, (B, Cin, H, W), dtype=jnp.float32)
        bound1 = 1.0 / jnp.sqrt(Cin * 9.0)
        bound2 = 1.0 / jnp.sqrt(Cout * 9.0)
        w1 = jax.random.uniform(kw1, (3, 3, Cin, Cout), jnp.float32, -bound1, bound1)
        b1 = jax.random.uniform(kb1, (Cout,), jnp.float32, -bound1, bound1)
        w2 = jax.random.uniform(kw2, (3, 3, Cout, Cout), jnp.float32, -bound2, bound2)
        b2 = jax.random.uniform(kb2, (Cout,), jnp.float32, -bound2, bound2)
        return x, w1, b1, w2, b2

    ks = jax.random.split(key, 4)

    # 1) Residual, same channels; im2col path; Bt=1 so grid=2 (both v7x cores busy).
    x, w1, b1, w2, b2 = make_case(ks[0], B=2, Cin=4, Cout=4, H=16, W=16)
    out = jax.block_until_ready(residual_conv_block(x, w1, b1, w2, b2, is_res=True))
    ref = _reference(x, w1, b1, w2, b2, is_res=True)
    assert out.shape == (2, 4, 16, 16)
    assert jnp.allclose(out, ref, atol=1e-4, rtol=1e-4), \
        "mismatch (is_res=True, same channels, im2col)"

    # 2) Channel-expanding, non-residual; im2col path.
    x, w1, b1, w2, b2 = make_case(ks[1], B=2, Cin=4, Cout=8, H=16, W=16)
    out = jax.block_until_ready(residual_conv_block(x, w1, b1, w2, b2, is_res=False))
    ref = _reference(x, w1, b1, w2, b2, is_res=False)
    assert out.shape == (2, 8, 16, 16)
    assert jnp.allclose(out, ref, atol=1e-4, rtol=1e-4), \
        "mismatch (is_res=False, im2col)"

    # 3) Batch-folded (Bt=2) + scratch-free per-tap matmul path (v7x large-C path).
    x, w1, b1, w2, b2 = make_case(ks[2], B=4, Cin=4, Cout=4, H=16, W=16)
    out = jax.block_until_ready(
        residual_conv_block(x, w1, b1, w2, b2, is_res=True, tap_matmul=True))
    ref = _reference(x, w1, b1, w2, b2, is_res=True)
    assert out.shape == (4, 4, 16, 16)
    assert jnp.allclose(out, ref, atol=1e-4, rtol=1e-4), \
        "mismatch (is_res=True, tap-matmul, batch-folded)"

    # 4) Batch-folded residual across channel change (x1 read back from centre tap).
    x, w1, b1, w2, b2 = make_case(ks[3], B=4, Cin=4, Cout=8, H=16, W=16)
    out = jax.block_until_ready(residual_conv_block(x, w1, b1, w2, b2, is_res=True))
    ref = _reference(x, w1, b1, w2, b2, is_res=True)
    assert out.shape == (4, 8, 16, 16)
    assert jnp.allclose(out, ref, atol=1e-4, rtol=1e-4), \
        "mismatch (is_res=True, channel-expanding, im2col)"

    # 5) Opt-in tanh GELU: smoke test only (numerics intentionally differ from erf).
    out = jax.block_until_ready(
        residual_conv_block(x, w1, b1, w2, b2, is_res=True, gelu_approx=True))
    assert bool(jnp.isfinite(out).all())

    print("KERNEL_OK")
</pallas_src>

<mosaic_0001>
module attributes {stable_mosaic.version = 11 : i64} {
  func.func @_residual_conv_block_kernel(%arg0: i32, %arg1: memref<1x4x256xf32, #tpu.memory_space<vmem>>, %arg2: memref<8x72xf32, #tpu.memory_space<vmem>>, %arg3: memref<8x1xf32, #tpu.memory_space<vmem>>, %arg4: memref<8x72xf32, #tpu.memory_space<vmem>>, %arg5: memref<8x1xf32, #tpu.memory_space<vmem>>, %arg6: memref<1x4x256xf32, #tpu.memory_space<vmem>>, %arg7: memref<72x256xf32, #tpu.memory_space<vmem>>) attributes {dimension_semantics = [#tpu.dimension_semantics<parallel>], iteration_bounds = array<i64: 2>, scalar_prefetch = 0 : i64, scratch_operands = 1 : i64, tpu.core_type = #tpu.core_type<tc>, window_params = [{transform_indices = @transform_0, window_bounds = array<i64: 1, 4, 256>}, {pipeline_mode = #tpu.pipeline_mode<synchronous>, transform_indices = @transform_1, window_bounds = array<i64: 8, 72>}, {pipeline_mode = #tpu.pipeline_mode<synchronous>, transform_indices = @transform_2, window_bounds = array<i64: 8, 1>}, {pipeline_mode = #tpu.pipeline_mode<synchronous>, transform_indices = @transform_3, window_bounds = array<i64: 8, 72>}, {pipeline_mode = #tpu.pipeline_mode<synchronous>, transform_indices = @transform_4, window_bounds = array<i64: 8, 1>}, {transform_indices = @transform_5, window_bounds = array<i64: 1, 4, 256>}]} {
    %0 = tpu.iota {dimensions = array<i32: 1>} : vector<1x256xi32>
    %1 = arith.sitofp %0 : vector<1x256xi32> to vector<1x256xf32>
    %cst = arith.constant 2.560000e+02 : f32
    %2 = vector.broadcast %cst : f32 to vector<1x256xf32>
    %3 = arith.divf %1, %2 : vector<1x256xf32>
    %4 = math.floor %3 : vector<1x256xf32>
    %cst_0 = arith.constant 2.560000e+02 : f32
    %5 = vector.broadcast %cst_0 : f32 to vector<1x256xf32>
    %6 = arith.mulf %4, %5 : vector<1x256xf32>
    %7 = arith.subf %1, %6 : vector<1x256xf32>
    %cst_1 = arith.constant 1.600000e+01 : f32
    %8 = vector.broadcast %cst_1 : f32 to vector<1x256xf32>
    %9 = arith.divf %7, %8 : vector<1x256xf32>
    %10 = math.floor %9 : vector<1x256xf32>
    %cst_2 = arith.constant 1.600000e+01 : f32
    %11 = vector.broadcast %cst_2 : f32 to vector<1x256xf32>
    %12 = arith.mulf %10, %11 : vector<1x256xf32>
    %13 = arith.subf %7, %12 : vector<1x256xf32>
    %cst_3 = arith.constant 1.000000e+00 : f32
    %14 = vector.broadcast %cst_3 : f32 to vector<1x256xf32>
    %15 = arith.cmpf oge, %10, %14 : vector<1x256xf32>
    %cst_4 = arith.constant 1.000000e+00 : f32
    %16 = vector.broadcast %cst_4 : f32 to vector<1x256xf32>
    %17 = arith.cmpf oge, %13, %16 : vector<1x256xf32>
    %18 = arith.andi %15, %17 : vector<1x256xi1>
    %cst_5 = arith.constant 1.000000e+00 : f32
    %19 = vector.broadcast %cst_5 : f32 to vector<1x256xf32>
    %20 = arith.cmpf oge, %10, %19 : vector<1x256xf32>
    %cst_6 = arith.constant 1.000000e+00 : f32
    %21 = vector.broadcast %cst_6 : f32 to vector<1x256xf32>
    %22 = arith.cmpf oge, %10, %21 : vector<1x256xf32>
    %cst_7 = arith.constant 1.400000e+01 : f32
    %23 = vector.broadcast %cst_7 : f32 to vector<1x256xf32>
    %24 = arith.cmpf ole, %13, %23 : vector<1x256xf32>
    %25 = arith.andi %22, %24 : vector<1x256xi1>
    %cst_8 = arith.constant 1.000000e+00 : f32
    %26 = vector.broadcast %cst_8 : f32 to vector<1x256xf32>
    %27 = arith.cmpf oge, %13, %26 : vector<1x256xf32>
    %cst_9 = arith.constant 1.400000e+01 : f32
    %28 = vector.broadcast %cst_9 : f32 to vector<1x256xf32>
    %29 = arith.cmpf ole, %13, %28 : vector<1x256xf32>
    %cst_10 = arith.constant 1.400000e+01 : f32
    %30 = vector.broadcast %cst_10 : f32 to vector<1x256xf32>
    %31 = arith.cmpf ole, %10, %30 : vector<1x256xf32>
    %cst_11 = arith.constant 1.000000e+00 : f32
    %32 = vector.broadcast %cst_11 : f32 to vector<1x256xf32>
    %33 = arith.cmpf oge, %13, %32 : vector<1x256xf32>
    %34 = arith.andi %31, %33 : vector<1x256xi1>
    %cst_12 = arith.constant 1.400000e+01 : f32
    %35 = vector.broadcast %cst_12 : f32 to vector<1x256xf32>
    %36 = arith.cmpf ole, %10, %35 : vector<1x256xf32>
    %cst_13 = arith.constant 1.400000e+01 : f32
    %37 = vector.broadcast %cst_13 : f32 to vector<1x256xf32>
    %38 = arith.cmpf ole, %10, %37 : vector<1x256xf32>
    %cst_14 = arith.constant 1.400000e+01 : f32
    %39 = vector.broadcast %cst_14 : f32 to vector<1x256xf32>
    %40 = arith.cmpf ole, %13, %39 : vector<1x256xf32>
    %41 = arith.andi %38, %40 : vector<1x256xi1>
    %c0 = arith.constant 0 : index
    %c0_15 = arith.constant 0 : index
    %c0_16 = arith.constant 0 : index
    %42 = vector.load %arg1[%c0, %c0_15, %c0_16] : memref<1x4x256xf32, #tpu.memory_space<vmem>>, vector<1x4x256xf32>
    %43 = vector.shape_cast %42 : vector<1x4x256xf32> to vector<4x256xf32>
    %cst_17 = arith.constant 0.000000e+00 : f32
    %44 = vector.broadcast %cst_17 : f32 to vector<4x256xf32>
    %45 = tpu.concatenate %43, %44 in 0 : vector<4x256xf32>, vector<4x256xf32> -> vector<8x256xf32>
    %c17_i32 = arith.constant 17 : i32
    %46 = tpu.dynamic_rotate %45 by %c17_i32 dim 1 : vector<8x256xf32>, i32 -> vector<8x256xf32>
    %cst_18 = arith.constant 0.000000e+00 : f32
    %47 = vector.shape_cast %18 : vector<1x256xi1> to vector<1x256xi1>
    %48 = vector.broadcast %47 : vector<1x256xi1> to vector<8x256xi1>
    %49 = vector.broadcast %cst_18 : f32 to vector<8x256xf32>
    %50 = arith.select %48, %46, %49 : vector<8x256xi1>, vector<8x256xf32>
    %c0_19 = arith.constant 0 : index
    %c0_20 = arith.constant 0 : index
    %51 = vector.load %arg7[%c0_19, %c0_20] : memref<72x256xf32, #tpu.memory_space<vmem>>, vector<8x256xf32>
    tpu.vector_store %arg7[%c0_19, %c0_20], %50 {strides = array<i32>} : memref<72x256xf32, #tpu.memory_space<vmem>>, vector<8x256xf32>,
    %c16_i32 = arith.constant 16 : i32
    %52 = tpu.dynamic_rotate %45 by %c16_i32 dim 1 : vector<8x256xf32>, i32 -> vector<8x256xf32>
    %cst_21 = arith.constant 0.000000e+00 : f32
    %53 = vector.shape_cast %20 : vector<1x256xi1> to vector<1x256xi1>
    %54 = vector.broadcast %53 : vector<1x256xi1> to vector<8x256xi1>
    %55 = vector.broadcast %cst_21 : f32 to vector<8x256xf32>
    %56 = arith.select %54, %52, %55 : vector<8x256xi1>, vector<8x256xf32>
    %c8 = arith.constant 8 : index
    %c0_22 = arith.constant 0 : index
    %57 = vector.load %arg7[%c8, %c0_22] : memref<72x256xf32, #tpu.memory_space<vmem>>, vector<8x256xf32>
    tpu.vector_store %arg7[%c8, %c0_22], %56 {strides = array<i32>} : memref<72x256xf32, #tpu.memory_space<vmem>>, vector<8x256xf32>,
    %c15_i32 = arith.constant 15 : i32
    %58 = tpu.dynamic_rotate %45 by %c15_i32 dim 1 : vector<8x256xf32>, i32 -> vector<8x256xf32>
    %cst_23 = arith.constant 0.000000e+00 : f32
    %59 = vector.shape_cast %25 : vector<1x256xi1> to vector<1x256xi1>
    %60 = vector.broadcast %59 : vector<1x256xi1> to vector<8x256xi1>
    %61 = vector.broadcast %cst_23 : f32 to vector<8x256xf32>
    %62 = arith.select %60, %58, %61 : vector<8x256xi1>, vector<8x256xf32>
    %c16 = arith.constant 16 : index
    %c0_24 = arith.constant 0 : index
    %63 = vector.load %arg7[%c16, %c0_24] : memref<72x256xf32, #tpu.memory_space<vmem>>, vector<8x256xf32>
    tpu.vector_store %arg7[%c16, %c0_24], %62 {strides = array<i32>} : memref<72x256xf32, #tpu.memory_space<vmem>>, vector<8x256xf32>,
    %c1_i32 = arith.constant 1 : i32
    %64 = tpu.dynamic_rotate %45 by %c1_i32 dim 1 : vector<8x256xf32>, i32 -> vector<8x256xf32>
    %cst_25 = arith.constant 0.000000e+00 : f32
    %65 = vector.shape_cast %27 : vector<1x256xi1> to vector<1x256xi1>
    %66 = vector.broadcast %65 : vector<1x256xi1> to vector<8x256xi1>
    %67 = vector.broadcast %cst_25 : f32 to vector<8x256xf32>
    %68 = arith.select %66, %64, %67 : vector<8x256xi1>, vector<8x256xf32>
    %c24 = arith.constant 24 : index
    %c0_26 = arith.constant 0 : index
    %69 = vector.load %arg7[%c24, %c0_26] : memref<72x256xf32, #tpu.memory_space<vmem>>, vector<8x256xf32>
    tpu.vector_store %arg7[%c24, %c0_26], %68 {strides = array<i32>} : memref<72x256xf32, #tpu.memory_space<vmem>>, vector<8x256xf32>,
    %c32 = arith.constant 32 : index
    %c0_27 = arith.constant 0 : index
    %70 = vector.load %arg7[%c32, %c0_27] : memref<72x256xf32, #tpu.memory_space<vmem>>, vector<8x256xf32>
    tpu.vector_store %arg7[%c32, %c0_27], %45 {strides = array<i32>} : memref<72x256xf32, #tpu.memory_space<vmem>>, vector<8x256xf32>,
    %c255_i32 = arith.constant 255 : i32
    %71 = tpu.dynamic_rotate %45 by %c255_i32 dim 1 : vector<8x256xf32>, i32 -> vector<8x256xf32>
    %cst_28 = arith.constant 0.000000e+00 : f32
    %72 = vector.shape_cast %29 : vector<1x256xi1> to vector<1x256xi1>
    %73 = vector.broadcast %72 : vector<1x256xi1> to vector<8x256xi1>
    %74 = vector.broadcast %cst_28 : f32 to vector<8x256xf32>
    %75 = arith.select %73, %71, %74 : vector<8x256xi1>, vector<8x256xf32>
    %c40 = arith.constant 40 : index
    %c0_29 = arith.constant 0 : index
    %76 = vector.load %arg7[%c40, %c0_29] : memref<72x256xf32, #tpu.memory_space<vmem>>, vector<8x256xf32>
    tpu.vector_store %arg7[%c40, %c0_29], %75 {strides = array<i32>} : memref<72x256xf32, #tpu.memory_space<vmem>>, vector<8x256xf32>,
    %c241_i32 = arith.constant 241 : i32
    %77 = tpu.dynamic_rotate %45 by %c241_i32 dim 1 : vector<8x256xf32>, i32 -> vector<8x256xf32>
    %cst_30 = arith.constant 0.000000e+00 : f32
    %78 = vector.shape_cast %34 : vector<1x256xi1> to vector<1x256xi1>
    %79 = vector.broadcast %78 : vector<1x256xi1> to vector<8x256xi1>
    %80 = vector.broadcast %cst_30 : f32 to vector<8x256xf32>
    %81 = arith.select %79, %77, %80 : vector<8x256xi1>, vector<8x256xf32>
    %c48 = arith.constant 48 : index
    %c0_31 = arith.constant 0 : index
    %82 = vector.load %arg7[%c48, %c0_31] : memref<72x256xf32, #tpu.memory_space<vmem>>, vector<8x256xf32>
    tpu.vector_store %arg7[%c48, %c0_31], %81 {strides = array<i32>} : memref<72x256xf32, #tpu.memory_space<vmem>>, vector<8x256xf32>,
    %c240_i32 = arith.constant 240 : i32
    %83 = tpu.dynamic_rotate %45 by %c240_i32 dim 1 : vector<8x256xf32>, i32 -> vector<8x256xf32>
    %cst_32 = arith.constant 0.000000e+00 : f32
    %84 = vector.shape_cast %36 : vector<1x256xi1> to vector<1x256xi1>
    %85 = vector.broadcast %84 : vector<1x256xi1> to vector<8x256xi1>
    %86 = vector.broadcast %cst_32 : f32 to vector<8x256xf32>
    %87 = arith.select %85, %83, %86 : vector<8x256xi1>, vector<8x256xf32>
    %c56 = arith.constant 56 : index
    %c0_33 = arith.constant 0 : index
    %88 = vector.load %arg7[%c56, %c0_33] : memref<72x256xf32, #tpu.memory_space<vmem>>, vector<8x256xf32>
    tpu.vector_store %arg7[%c56, %c0_33], %87 {strides = array<i32>} : memref<72x256xf32, #tpu.memory_space<vmem>>, vector<8x256xf32>,
    %c239_i32 = arith.constant 239 : i32
    %89 = tpu.dynamic_rotate %45 by %c239_i32 dim 1 : vector<8x256xf32>, i32 -> vector<8x256xf32>
    %cst_34 = arith.constant 0.000000e+00 : f32
    %90 = vector.shape_cast %41 : vector<1x256xi1> to vector<1x256xi1>
    %91 = vector.broadcast %90 : vector<1x256xi1> to vector<8x256xi1>
    %92 = vector.broadcast %cst_34 : f32 to vector<8x256xf32>
    %93 = arith.select %91, %89, %92 : vector<8x256xi1>, vector<8x256xf32>
    %c64 = arith.constant 64 : index
    %c0_35 = arith.constant 0 : index
    %94 = vector.load %arg7[%c64, %c0_35] : memref<72x256xf32, #tpu.memory_space<vmem>>, vector<8x256xf32>
    tpu.vector_store %arg7[%c64, %c0_35], %93 {strides = array<i32>} : memref<72x256xf32, #tpu.memory_space<vmem>>, vector<8x256xf32>,
    %c0_36 = arith.constant 0 : index
    %c0_37 = arith.constant 0 : index
    %95 = vector.load %arg2[%c0_36, %c0_37] : memref<8x72xf32, #tpu.memory_space<vmem>>, vector<8x72xf32>
    %c0_38 = arith.constant 0 : index
    %c0_39 = arith.constant 0 : index
    %96 = vector.load %arg7[%c0_38, %c0_39] : memref<72x256xf32, #tpu.memory_space<vmem>>, vector<72x256xf32>
    %cst_40 = arith.constant dense<0.000000e+00> : vector<8x256xf32>
    %97 = tpu.matmul %95, %96, %cst_40 {dimension_numbers = #tpu.dot_dimension_numbers<[1], [0], [0], [1], [0, 0, 1, 1], [], []>} : vector<8x72xf32>, vector<72x256xf32>, vector<8x256xf32> -> vector<8x256xf32>
    %c0_41 = arith.constant 0 : index
    %c0_42 = arith.constant 0 : index
    %98 = vector.load %arg3[%c0_41, %c0_42] : memref<8x1xf32, #tpu.memory_space<vmem>>, vector<8x1xf32>
    %99 = vector.broadcast %98 : vector<8x1xf32> to vector<8x256xf32>
    %100 = arith.addf %97, %99 : vector<8x256xf32>
    %cst_43 = arith.constant dense<0.000000e+00> : vector<8xf32>
    %101 = vector.multi_reduction <add>, %100, %cst_43 [1] : vector<8x256xf32> to vector<8xf32>
    %102 = vector.shape_cast %101 : vector<8xf32> to vector<8x1xf32>
    %cst_44 = arith.constant 2.560000e+02 : f32
    %103 = vector.broadcast %cst_44 : f32 to vector<8x1xf32>
    %104 = arith.divf %102, %103 : vector<8x1xf32>
    %105 = vector.broadcast %104 : vector<8x1xf32> to vector<8x256xf32>
    %106 = arith.subf %100, %105 : vector<8x256xf32>
    %107 = arith.mulf %106, %106 : vector<8x256xf32>
    %cst_45 = arith.constant dense<0.000000e+00> : vector<8xf32>
    %108 = vector.multi_reduction <add>, %107, %cst_45 [1] : vector<8x256xf32> to vector<8xf32>
    %109 = vector.shape_cast %108 : vector<8xf32> to vector<8x1xf32>
    %cst_46 = arith.constant 2.560000e+02 : f32
    %110 = vector.broadcast %cst_46 : f32 to vector<8x1xf32>
    %111 = arith.divf %109, %110 : vector<8x1xf32>
    %112 = vector.broadcast %104 : vector<8x1xf32> to vector<8x256xf32>
    %113 = arith.subf %100, %112 : vector<8x256xf32>
    %cst_47 = arith.constant 9.99999974E-6 : f32
    %114 = vector.broadcast %cst_47 : f32 to vector<8x1xf32>
    %115 = arith.addf %111, %114 : vector<8x1xf32>
    %116 = math.rsqrt %115 : vector<8x1xf32>
    %117 = vector.broadcast %116 : vector<8x1xf32> to vector<8x256xf32>
    %118 = arith.mulf %113, %117 : vector<8x256xf32>
    %cst_48 = arith.constant 5.000000e-01 : f32
    %119 = vector.broadcast %cst_48 : f32 to vector<8x256xf32>
    %120 = arith.mulf %119, %118 : vector<8x256xf32>
    %cst_49 = arith.constant 2.000000e+00 : f32
    %121 = math.sqrt %cst_49 : f32
    %cst_50 = arith.constant 1.000000e+00 : f32
    %122 = arith.divf %cst_50, %121 : f32
    %123 = vector.broadcast %122 : f32 to vector<8x256xf32>
    %124 = arith.mulf %118, %123 : vector<8x256xf32>
    %125 = math.erf %124 : vector<8x256xf32>
    %cst_51 = arith.constant 1.000000e+00 : f32
    %126 = vector.broadcast %cst_51 : f32 to vector<8x256xf32>
    %127 = arith.addf %126, %125 : vector<8x256xf32>
    %128 = arith.mulf %120, %127 : vector<8x256xf32>
    %c17_i32_52 = arith.constant 17 : i32
    %129 = tpu.dynamic_rotate %128 by %c17_i32_52 dim 1 : vector<8x256xf32>, i32 -> vector<8x256xf32>
    %cst_53 = arith.constant 0.000000e+00 : f32
    %130 = vector.shape_cast %18 : vector<1x256xi1> to vector<1x256xi1>
    %131 = vector.broadcast %130 : vector<1x256xi1> to vector<8x256xi1>
    %132 = vector.broadcast %cst_53 : f32 to vector<8x256xf32>
    %133 = arith.select %131, %129, %132 : vector<8x256xi1>, vector<8x256xf32>
    %c0_54 = arith.constant 0 : index
    %c0_55 = arith.constant 0 : index
    %134 = vector.load %arg7[%c0_54, %c0_55] : memref<72x256xf32, #tpu.memory_space<vmem>>, vector<8x256xf32>
    tpu.vector_store %arg7[%c0_54, %c0_55], %133 {strides = array<i32>} : memref<72x256xf32, #tpu.memory_space<vmem>>, vector<8x256xf32>,
    %c16_i32_56 = arith.constant 16 : i32
    %135 = tpu.dynamic_rotate %128 by %c16_i32_56 dim 1 : vector<8x256xf32>, i32 -> vector<8x256xf32>
    %cst_57 = arith.constant 0.000000e+00 : f32
    %136 = vector.shape_cast %20 : vector<1x256xi1> to vector<1x256xi1>
    %137 = vector.broadcast %136 : vector<1x256xi1> to vector<8x256xi1>
    %138 = vector.broadcast %cst_57 : f32 to vector<8x256xf32>
    %139 = arith.select %137, %135, %138 : vector<8x256xi1>, vector<8x256xf32>
    %c8_58 = arith.constant 8 : index
    %c0_59 = arith.constant 0 : index
    %140 = vector.load %arg7[%c8_58, %c0_59] : memref<72x256xf32, #tpu.memory_space<vmem>>, vector<8x256xf32>
    tpu.vector_store %arg7[%c8_58, %c0_59], %139 {strides = array<i32>} : memref<72x256xf32, #tpu.memory_space<vmem>>, vector<8x256xf32>,
    %c15_i32_60 = arith.constant 15 : i32
    %141 = tpu.dynamic_rotate %128 by %c15_i32_60 dim 1 : vector<8x256xf32>, i32 -> vector<8x256xf32>
    %cst_61 = arith.constant 0.000000e+00 : f32
    %142 = vector.shape_cast %25 : vector<1x256xi1> to vector<1x256xi1>
    %143 = vector.broadcast %142 : vector<1x256xi1> to vector<8x256xi1>
    %144 = vector.broadcast %cst_61 : f32 to vector<8x256xf32>
    %145 = arith.select %143, %141, %144 : vector<8x256xi1>, vector<8x256xf32>
    %c16_62 = arith.constant 16 : index
    %c0_63 = arith.constant 0 : index
    %146 = vector.load %arg7[%c16_62, %c0_63] : memref<72x256xf32, #tpu.memory_space<vmem>>, vector<8x256xf32>
    tpu.vector_store %arg7[%c16_62, %c0_63], %145 {strides = array<i32>} : memref<72x256xf32, #tpu.memory_space<vmem>>, vector<8x256xf32>,
    %c1_i32_64 = arith.constant 1 : i32
    %147 = tpu.dynamic_rotate %128 by %c1_i32_64 dim 1 : vector<8x256xf32>, i32 -> vector<8x256xf32>
    %cst_65 = arith.constant 0.000000e+00 : f32
    %148 = vector.shape_cast %27 : vector<1x256xi1> to vector<1x256xi1>
    %149 = vector.broadcast %148 : vector<1x256xi1> to vector<8x256xi1>
    %150 = vector.broadcast %cst_65 : f32 to vector<8x256xf32>
    %151 = arith.select %149, %147, %150 : vector<8x256xi1>, vector<8x256xf32>
    %c24_66 = arith.constant 24 : index
    %c0_67 = arith.constant 0 : index
    %152 = vector.load %arg7[%c24_66, %c0_67] : memref<72x256xf32, #tpu.memory_space<vmem>>, vector<8x256xf32>
    tpu.vector_store %arg7[%c24_66, %c0_67], %151 {strides = array<i32>} : memref<72x256xf32, #tpu.memory_space<vmem>>, vector<8x256xf32>,
    %c32_68 = arith.constant 32 : index
    %c0_69 = arith.constant 0 : index
    %153 = vector.load %arg7[%c32_68, %c0_69] : memref<72x256xf32, #tpu.memory_space<vmem>>, vector<8x256xf32>
    tpu.vector_store %arg7[%c32_68, %c0_69], %128 {strides = array<i32>} : memref<72x256xf32, #tpu.memory_space<vmem>>, vector<8x256xf32>,
    %c255_i32_70 = arith.constant 255 : i32
    %154 = tpu.dynamic_rotate %128 by %c255_i32_70 dim 1 : vector<8x256xf32>, i32 -> vector<8x256xf32>
    %cst_71 = arith.constant 0.000000e+00 : f32
    %155 = vector.shape_cast %29 : vector<1x256xi1> to vector<1x256xi1>
    %156 = vector.broadcast %155 : vector<1x256xi1> to vector<8x256xi1>
    %157 = vector.broadcast %cst_71 : f32 to vector<8x256xf32>
    %158 = arith.select %156, %154, %157 : vector<8x256xi1>, vector<8x256xf32>
    %c40_72 = arith.constant 40 : index
    %c0_73 = arith.constant 0 : index
    %159 = vector.load %arg7[%c40_72, %c0_73] : memref<72x256xf32, #tpu.memory_space<vmem>>, vector<8x256xf32>
    tpu.vector_store %arg7[%c40_72, %c0_73], %158 {strides = array<i32>} : memref<72x256xf32, #tpu.memory_space<vmem>>, vector<8x256xf32>,
    %c241_i32_74 = arith.constant 241 : i32
    %160 = tpu.dynamic_rotate %128 by %c241_i32_74 dim 1 : vector<8x256xf32>, i32 -> vector<8x256xf32>
    %cst_75 = arith.constant 0.000000e+00 : f32
    %161 = vector.shape_cast %34 : vector<1x256xi1> to vector<1x256xi1>
    %162 = vector.broadcast %161 : vector<1x256xi1> to vector<8x256xi1>
    %163 = vector.broadcast %cst_75 : f32 to vector<8x256xf32>
    %164 = arith.select %162, %160, %163 : vector<8x256xi1>, vector<8x256xf32>
    %c48_76 = arith.constant 48 : index
    %c0_77 = arith.constant 0 : index
    %165 = vector.load %arg7[%c48_76, %c0_77] : memref<72x256xf32, #tpu.memory_space<vmem>>, vector<8x256xf32>
    tpu.vector_store %arg7[%c48_76, %c0_77], %164 {strides = array<i32>} : memref<72x256xf32, #tpu.memory_space<vmem>>, vector<8x256xf32>,
    %c240_i32_78 = arith.constant 240 : i32
    %166 = tpu.dynamic_rotate %128 by %c240_i32_78 dim 1 : vector<8x256xf32>, i32 -> vector<8x256xf32>
    %cst_79 = arith.constant 0.000000e+00 : f32
    %167 = vector.shape_cast %36 : vector<1x256xi1> to vector<1x256xi1>
    %168 = vector.broadcast %167 : vector<1x256xi1> to vector<8x256xi1>
    %169 = vector.broadcast %cst_79 : f32 to vector<8x256xf32>
    %170 = arith.select %168, %166, %169 : vector<8x256xi1>, vector<8x256xf32>
    %c56_80 = arith.constant 56 : index
    %c0_81 = arith.constant 0 : index
    %171 = vector.load %arg7[%c56_80, %c0_81] : memref<72x256xf32, #tpu.memory_space<vmem>>, vector<8x256xf32>
    tpu.vector_store %arg7[%c56_80, %c0_81], %170 {strides = array<i32>} : memref<72x256xf32, #tpu.memory_space<vmem>>, vector<8x256xf32>,
    %c239_i32_82 = arith.constant 239 : i32
    %172 = tpu.dynamic_rotate %128 by %c239_i32_82 dim 1 : vector<8x256xf32>, i32 -> vector<8x256xf32>
    %cst_83 = arith.constant 0.000000e+00 : f32
    %173 = vector.shape_cast %41 : vector<1x256xi1> to vector<1x256xi1>
    %174 = vector.broadcast %173 : vector<1x256xi1> to vector<8x256xi1>
    %175 = vector.broadcast %cst_83 : f32 to vector<8x256xf32>
    %176 = arith.select %174, %172, %175 : vector<8x256xi1>, vector<8x256xf32>
    %c64_84 = arith.constant 64 : index
    %c0_85 = arith.constant 0 : index
    %177 = vector.load %arg7[%c64_84, %c0_85] : memref<72x256xf32, #tpu.memory_space<vmem>>, vector<8x256xf32>
    tpu.vector_store %arg7[%c64_84, %c0_85], %176 {strides = array<i32>} : memref<72x256xf32, #tpu.memory_space<vmem>>, vector<8x256xf32>,
    %c0_86 = arith.constant 0 : index
    %c0_87 = arith.constant 0 : index
    %178 = vector.load %arg4[%c0_86, %c0_87] : memref<8x72xf32, #tpu.memory_space<vmem>>, vector<8x72xf32>
    %c0_88 = arith.constant 0 : index
    %c0_89 = arith.constant 0 : index
    %179 = vector.load %arg7[%c0_88, %c0_89] : memref<72x256xf32, #tpu.memory_space<vmem>>, vector<72x256xf32>
    %cst_90 = arith.constant dense<0.000000e+00> : vector<8x256xf32>
    %180 = tpu.matmul %178, %179, %cst_90 {dimension_numbers = #tpu.dot_dimension_numbers<[1], [0], [0], [1], [0, 0, 1, 1], [], []>} : vector<8x72xf32>, vector<72x256xf32>, vector<8x256xf32> -> vector<8x256xf32>
    %c0_91 = arith.constant 0 : index
    %c0_92 = arith.constant 0 : index
    %181 = vector.load %arg5[%c0_91, %c0_92] : memref<8x1xf32, #tpu.memory_space<vmem>>, vector<8x1xf32>
    %182 = vector.broadcast %181 : vector<8x1xf32> to vector<8x256xf32>
    %183 = arith.addf %180, %182 : vector<8x256xf32>
    %cst_93 = arith.constant dense<0.000000e+00> : vector<8xf32>
    %184 = vector.multi_reduction <add>, %183, %cst_93 [1] : vector<8x256xf32> to vector<8xf32>
    %185 = vector.shape_cast %184 : vector<8xf32> to vector<8x1xf32>
    %cst_94 = arith.constant 2.560000e+02 : f32
    %186 = vector.broadcast %cst_94 : f32 to vector<8x1xf32>
    %187 = arith.divf %185, %186 : vector<8x1xf32>
    %188 = vector.broadcast %187 : vector<8x1xf32> to vector<8x256xf32>
    %189 = arith.subf %183, %188 : vector<8x256xf32>
    %190 = arith.mulf %189, %189 : vector<8x256xf32>
    %cst_95 = arith.constant dense<0.000000e+00> : vector<8xf32>
    %191 = vector.multi_reduction <add>, %190, %cst_95 [1] : vector<8x256xf32> to vector<8xf32>
    %192 = vector.shape_cast %191 : vector<8xf32> to vector<8x1xf32>
    %cst_96 = arith.constant 2.560000e+02 : f32
    %193 = vector.broadcast %cst_96 : f32 to vector<8x1xf32>
    %194 = arith.divf %192, %193 : vector<8x1xf32>
    %195 = vector.broadcast %187 : vector<8x1xf32> to vector<8x256xf32>
    %196 = arith.subf %183, %195 : vector<8x256xf32>
    %cst_97 = arith.constant 9.99999974E-6 : f32
    %197 = vector.broadcast %cst_97 : f32 to vector<8x1xf32>
    %198 = arith.addf %194, %197 : vector<8x1xf32>
    %199 = math.rsqrt %198 : vector<8x1xf32>
    %200 = vector.broadcast %199 : vector<8x1xf32> to vector<8x256xf32>
    %201 = arith.mulf %196, %200 : vector<8x256xf32>
    %cst_98 = arith.constant 5.000000e-01 : f32
    %202 = vector.broadcast %cst_98 : f32 to vector<8x256xf32>
    %203 = arith.mulf %202, %201 : vector<8x256xf32>
    %cst_99 = arith.constant 2.000000e+00 : f32
    %204 = math.sqrt %cst_99 : f32
    %cst_100 = arith.constant 1.000000e+00 : f32
    %205 = arith.divf %cst_100, %204 : f32
    %206 = vector.broadcast %205 : f32 to vector<8x256xf32>
    %207 = arith.mulf %201, %206 : vector<8x256xf32>
    %208 = math.erf %207 : vector<8x256xf32>
    %cst_101 = arith.constant 1.000000e+00 : f32
    %209 = vector.broadcast %cst_101 : f32 to vector<8x256xf32>
    %210 = arith.addf %209, %208 : vector<8x256xf32>
    %211 = arith.mulf %203, %210 : vector<8x256xf32>
    %212 = vector.extract_strided_slice %211 {offsets = [0, 0], sizes = [4, 256], strides = [1, 1]} : vector<8x256xf32> to vector<4x256xf32>
    %c0_102 = arith.constant 0 : index
    %c0_103 = arith.constant 0 : index
    %c0_104 = arith.constant 0 : index
    %213 = vector.load %arg1[%c0_102, %c0_103, %c0_104] : memref<1x4x256xf32, #tpu.memory_space<vmem>>, vector<1x4x256xf32>
    %214 = vector.shape_cast %213 : vector<1x4x256xf32> to vector<4x256xf32>
    %215 = arith.addf %214, %212 : vector<4x256xf32>
    %cst_105 = arith.constant 1.414000e+00 : f32
    %216 = vector.broadcast %cst_105 : f32 to vector<4x256xf32>
    %217 = arith.divf %215, %216 : vector<4x256xf32>
    %c0_106 = arith.constant 0 : index
    %c0_107 = arith.constant 0 : index
    %c0_108 = arith.constant 0 : index
    %218 = vector.load %arg6[%c0_106, %c0_107, %c0_108] : memref<1x4x256xf32, #tpu.memory_space<vmem>>, vector<1x4x256xf32>
    %219 = vector.shape_cast %218 : vector<1x4x256xf32> to vector<4x256xf32>
    %220 = vector.shape_cast %217 : vector<4x256xf32> to vector<1x4x256xf32>
    tpu.vector_store %arg6[%c0_106, %c0_107, %c0_108], %220 {strides = array<i32>} : memref<1x4x256xf32, #tpu.memory_space<vmem>>, vector<1x4x256xf32>,
    return
  }
  func.func @transform_0(%arg0: i32) -> (i32, i32, i32) {
    %c0_i32 = arith.constant 0 : i32
    %c0_i32_0 = arith.constant 0 : i32
    %c0_i32_1 = arith.constant 0 : i32
    return %arg0, %c0_i32, %c0_i32_0 : i32, i32, i32
  }
  func.func @transform_1(%arg0: i32) -> (i32, i32) {
    %c0_i32 = arith.constant 0 : i32
    %c0_i32_0 = arith.constant 0 : i32
    %c0_i32_1 = arith.constant 0 : i32
    return %c0_i32, %c0_i32_0 : i32, i32
  }
  func.func @transform_2(%arg0: i32) -> (i32, i32) {
    %c0_i32 = arith.constant 0 : i32
    %c0_i32_0 = arith.constant 0 : i32
    %c0_i32_1 = arith.constant 0 : i32
    return %c0_i32, %c0_i32_0 : i32, i32
  }
  func.func @transform_3(%arg0: i32) -> (i32, i32) {
    %c0_i32 = arith.constant 0 : i32
    %c0_i32_0 = arith.constant 0 : i32
    %c0_i32_1 = arith.constant 0 : i32
    return %c0_i32, %c0_i32_0 : i32, i32
  }
  func.func @transform_4(%arg0: i32) -> (i32, i32) {
    %c0_i32 = arith.constant 0 : i32
    %c0_i32_0 = arith.constant 0 : i32
    %c0_i32_1 = arith.constant 0 : i32
    return %c0_i32, %c0_i32_0 : i32, i32
  }
  func.func @transform_5(%arg0: i32) -> (i32, i32, i32) {
    %c0_i32 = arith.constant 0 : i32
    %c0_i32_0 = arith.constant 0 : i32
    %c0_i32_1 = arith.constant 0 : i32
    return %arg0, %c0_i32, %c0_i32_0 : i32, i32, i32
  }
}

</mosaic_0001>

<llo_original>
// kernel: tpu_custom_call.1
$region0: #{tpu_custom_call.1}
  #allocation0 [shape = 'u32[]', space=smem, size = 0x4, offset = 0x4, fixed_abs, tag = 'smem constant byte address 0x4 - core index']
  #allocation1 [shape = 'u32[144,128]{1,0:T(1,128)}', space=vmem, size = 0x12000, scoped, tag = 'internal scratch']
  #allocation2 [shape = 'f32[72,256]{1,0:T(8,128)}', space=vmem, size = 0x12000, scoped, tag = 'scratch operand']
  %s0 = inlined_call_operand.vmem [shape: f32[2,4,256], index: 0, kind: input, shape index: {}]
  %s1 = inlined_call_operand.hbm [shape: f32[8,72], index: 1, kind: input, shape index: {}]
  %s2 = inlined_call_operand.vmem [shape: f32[8,1], index: 2, kind: input, shape index: {}]
  %s3 = inlined_call_operand.vmem [shape: f32[8,72], index: 3, kind: input, shape index: {}]
  %s4 = inlined_call_operand.vmem [shape: f32[8,1], index: 4, kind: input, shape index: {}]
  %s5 = inlined_call_operand.hbm [shape: f32[2,4,256], index: 5, kind: output, shape index: {}]
  %s6 = sld [smem:[#allocation0]]
  $region57: #{tpu_custom_call.1} parent=0
    _
  %s8 = ssub.s32 1, %s6
  %s9 = scalar_select 0, %s8, %s6
  $region1: #{tpu_custom_call.1} parent=0
    #allocation3 [shape = 'u8[4096]{0}', space=vmem, size = 0x1000, scoped, tag = 'input window, operand 1, single buffered']
    #allocation4 [shape = 's32[2]{0}', space=sflag, size = 0x8, scoped, tag = 'scoped memory for tpu_custom_call.1']
    #allocation5 [shape = 's32[2]{0}', space=sflag, size = 0x8, scoped, tag = 'scoped memory for tpu_custom_call.1']
    #allocation6 [shape = 'u8[8192]{0}', space=vmem, size = 0x2000, scoped, tag = 'output window, operand 0']
    %10 = vsyncpa [#allocation4], 0
    %11 = vsyncpa [#allocation5], 0
    %s12 = scalar_lea.sflag [#allocation5], 1
    %13 = vsyncpa %s12, 0
    loop: start=0, step=1, limit=4
    $region2: #{tpu_custom_call.1} parent=1 // loop_pre_header
      _
    $region3: #{tpu_custom_call.1} parent=1 // loop_header
      %s15 = sphi 0, %s19
      %p16 = scmp.ge.s32.totalorder %s15, 4
      %s25 = sphi 0, %s27
      %s28 = sphi 0, %s25
      %s29 = sphi 0, %s28
      %s45 = sphi 0, %s29
      %s49 = sphi 0, %s49
      %s51 = sphi 0, %s49
      %s52 = sphi 0, %s51
      %s66 = sphi 0, %s52
      %s70 = sphi 0, %s70
      %s72 = sphi 0, %s70
      %s73 = sphi 0, %s72
      %s87 = sphi 0, %s73
      %s91 = sphi 0, %s91
      %s93 = sphi 0, %s91
      %s94 = sphi 0, %s93
      %s108 = sphi 0, %s94
      %s112 = sphi 0, %s112
      %s114 = sphi 0, %s112
      %s115 = sphi 0, %s114
      %s129 = sphi 0, %s115
      %s135 = sphi 0, %s137
      %s138 = sphi 0, %s135
      %s139 = sphi 0, %s138
      %s155 = sphi 0, %s139
    $region4: #{tpu_custom_call.1} parent=1 // loop_header_branch
      %18 = sbr.rel (%p16) target = $region8
    $region5: #{tpu_custom_call.1} parent=1 // loop_body
      %s20 = ssub.s32 %s15, 1
      %s21 = ssub.s32 %s15, 2
      %s22 = sadd.s32 %s15, 1
      %s23 = ssub.s32 %s15, %s22
      %p24 = scmp.eq.s32.totalorder %s23, 0
      %s26 = sadd.s32 %s25, 1
      %s27 = scalar_select %p24, %s25, %s26
      %p30 = pneg %p24
      %p31 = scmp.eq.s32.totalorder %s15, 1
      %p32 = por %p30, %p31
      %p33 = scmp.ne.s32.totalorder %s25, %s28
      %p34 = scmp.eq.s32.totalorder %s15, 0
      %p35 = por %p33, %p34
      %p36 = scmp.ne.s32.totalorder %s25, %s28
      %p37 = scmp.eq.s32.totalorder %s20, 1
      %p38 = por %p36, %p37
      %p39 = scmp.ne.s32.totalorder %s28, %s29
      %p40 = scmp.eq.s32.totalorder %s20, 0
      %p41 = por %p39, %p40
      %p42 = scmp.ne.s32.totalorder %s28, %s29
      %p43 = scmp.eq.s32.totalorder %s21, 1
      %p44 = por %p42, %p43
      %p46 = scmp.ne.s32.totalorder %s29, %s45
      %p47 = scmp.eq.s32.totalorder %s21, 0
      %p48 = por %p46, %p47
      %s50 = sadd.s32 %s49, 1
      %p53 = scmp.eq.s32.totalorder %s15, 1
      %p54 = scmp.ne.s32.totalorder %s49, %s51
      %p55 = scmp.eq.s32.totalorder %s15, 0
      %p56 = por %p54, %p55
      %p57 = scmp.ne.s32.totalorder %s49, %s51
      %p58 = scmp.eq.s32.totalorder %s20, 1
      %p59 = por %p57, %p58
      %p60 = scmp.ne.s32.totalorder %s51, %s52
      %p61 = scmp.eq.s32.totalorder %s20, 0
      %p62 = por %p60, %p61
      %p63 = scmp.ne.s32.totalorder %s51, %s52
      %p64 = scmp.eq.s32.totalorder %s21, 1
      %p65 = por %p63, %p64
      %p67 = scmp.ne.s32.totalorder %s52, %s66
      %p68 = scmp.eq.s32.totalorder %s21, 0
      %p69 = por %p67, %p68
      %s71 = sadd.s32 %s70, 1
      %p74 = scmp.eq.s32.totalorder %s15, 1
      %p75 = scmp.ne.s32.totalorder %s70, %s72
      %p76 = scmp.eq.s32.totalorder %s15, 0
      %p77 = por %p75, %p76
      %p78 = scmp.ne.s32.totalorder %s70, %s72
      %p79 = scmp.eq.s32.totalorder %s20, 1
      %p80 = por %p78, %p79
      %p81 = scmp.ne.s32.totalorder %s72, %s73
      %p82 = scmp.eq.s32.totalorder %s20, 0
      %p83 = por %p81, %p82
      %p84 = scmp.ne.s32.totalorder %s72, %s73
      %p85 = scmp.eq.s32.totalorder %s21, 1
      %p86 = por %p84, %p85
      %p88 = scmp.ne.s32.totalorder %s73, %s87
      %p89 = scmp.eq.s32.totalorder %s21, 0
      %p90 = por %p88, %p89
      %s92 = sadd.s32 %s91, 1
      %p95 = scmp.eq.s32.totalorder %s15, 1
      %p96 = scmp.ne.s32.totalorder %s91, %s93
      %p97 = scmp.eq.s32.totalorder %s15, 0
      %p98 = por %p96, %p97
      %p99 = scmp.ne.s32.totalorder %s91, %s93
      %p100 = scmp.eq.s32.totalorder %s20, 1
      %p101 = por %p99, %p100
      %p102 = scmp.ne.s32.totalorder %s93, %s94
      %p103 = scmp.eq.s32.totalorder %s20, 0
      %p104 = por %p102, %p103
      %p105 = scmp.ne.s32.totalorder %s93, %s94
      %p106 = scmp.eq.s32.totalorder %s21, 1
      %p107 = por %p105, %p106
      %p109 = scmp.ne.s32.totalorder %s94, %s108
      %p110 = scmp.eq.s32.totalorder %s21, 0
      %p111 = por %p109, %p110
      %s113 = sadd.s32 %s112, 1
      %p116 = scmp.eq.s32.totalorder %s15, 1
      %p117 = scmp.ne.s32.totalorder %s112, %s114
      %p118 = scmp.eq.s32.totalorder %s15, 0
      %p119 = por %p117, %p118
      %p120 = scmp.ne.s32.totalorder %s112, %s114
      %p121 = scmp.eq.s32.totalorder %s20, 1
      %p122 = por %p120, %p121
      %p123 = scmp.ne.s32.totalorder %s114, %s115
      %p124 = scmp.eq.s32.totalorder %s20, 0
      %p125 = por %p123, %p124
      %p126 = scmp.ne.s32.totalorder %s114, %s115
      %p127 = scmp.eq.s32.totalorder %s21, 1
      %p128 = por %p126, %p127
      %p130 = scmp.ne.s32.totalorder %s115, %s129
      %p131 = scmp.eq.s32.totalorder %s21, 0
      %p132 = por %p130, %p131
      %s133 = ssub.s32 %s15, %s22
      %p134 = scmp.eq.s32.totalorder %s133, 0
      %s136 = sadd.s32 %s135, 1
      %s137 = scalar_select %p134, %s135, %s136
      %p140 = pneg %p134
      %p141 = scmp.eq.s32.totalorder %s15, 1
      %p142 = por %p140, %p141
      %p143 = scmp.ne.s32.totalorder %s135, %s138
      %p144 = scmp.eq.s32.totalorder %s15, 0
      %p145 = por %p143, %p144
      %p146 = scmp.ne.s32.totalorder %s135, %s138
      %p147 = scmp.eq.s32.totalorder %s20, 1
      %p148 = por %p146, %p147
      %p149 = scmp.ne.s32.totalorder %s138, %s139
      %p150 = scmp.eq.s32.totalorder %s20, 0
      %p151 = por %p149, %p150
      %p152 = scmp.ne.s32.totalorder %s138, %s139
      %p153 = scmp.eq.s32.totalorder %s21, 1
      %p154 = por %p152, %p153
      %p156 = scmp.ne.s32.totalorder %s139, %s155
      %p157 = scmp.eq.s32.totalorder %s21, 0
      %p158 = por %p156, %p157
      %p159 = scmp.le.s32.totalorder 1, %s15
      %p160 = scmp.lt.s32.totalorder %s15, 3
      %p161 = pnand %p159, %p160
      %p162 = pneg %p161
      // Predicated region
      $region9: #{tpu_custom_call.1} parent=5 // pred_check
        _
      $region10: #{tpu_custom_call.1} parent=5 // pred_check_branch
        %164 = sbr.rel (%p161) target = $region12
      $region11: #{tpu_custom_call.1} parent=5 // pred_region
        %s165 = ssub.s32 %s15, 1
        // Predicated region
        $region13: #{tpu_custom_call.1} parent=11 // pred_check
          %p166 = pneg %p62
        $region14: #{tpu_custom_call.1} parent=11 // pred_check_branch
          %168 = sbr.rel (%p166) target = $region16
        $region15: #{tpu_custom_call.1} parent=11 // pred_region
          %s170 = ssub.s32 128, 128
          %171 = vsyncadd [#allocation4], %s170
          %s173 = sshll.u32 [#allocation3], 4
          %s174 = int_to_ptr.vmem [resolvable:$true] %s173
          %176 = dma.hbm_to_vmem [thread:$0]  %s1, 128, %s174, [#allocation4]
        $region16: #{tpu_custom_call.1} parent=11 // pred_fallthru
          _
        // Predicated region
        $region17: #{tpu_custom_call.1} parent=11 // pred_check
          %p177 = pneg %p83
        $region18: #{tpu_custom_call.1} parent=11 // pred_check_branch
          %179 = sbr.rel (%p177) target = $region20
        $region19: #{tpu_custom_call.1} parent=11 // pred_region
          _
        $region20: #{tpu_custom_call.1} parent=11 // pred_fallthru
          _
        // Predicated region
        $region21: #{tpu_custom_call.1} parent=11 // pred_check
          %p180 = pneg %p104
        $region22: #{tpu_custom_call.1} parent=11 // pred_check_branch
          %182 = sbr.rel (%p180) target = $region24
        $region23: #{tpu_custom_call.1} parent=11 // pred_region
          _
        $region24: #{tpu_custom_call.1} parent=11 // pred_fallthru
          _
        // Predicated region
        $region25: #{tpu_custom_call.1} parent=11 // pred_check
          %p183 = pneg %p125
        $region26: #{tpu_custom_call.1} parent=11 // pred_check_branch
          %185 = sbr.rel (%p183) target = $region28
        $region27: #{tpu_custom_call.1} parent=11 // pred_region
          _
        $region28: #{tpu_custom_call.1} parent=11 // pred_fallthru
          _
      $region12: #{tpu_custom_call.1} parent=5 // pred_fallthru
        _
      %p186 = scmp.lt.s32.totalorder %s15, 2
      // Predicated region
      $region29: #{tpu_custom_call.1} parent=5 // pred_check
        %p187 = pneg %p186
      $region30: #{tpu_custom_call.1} parent=5 // pred_check_branch
        %189 = sbr.rel (%p187) target = $region32
      $region31: #{tpu_custom_call.1} parent=5 // pred_region
        // Predicated region
        $region33: #{tpu_custom_call.1} parent=31 // pred_check
          %p190 = pneg %p35
        $region34: #{tpu_custom_call.1} parent=31 // pred_check_branch
          %192 = sbr.rel (%p190) target = $region36
        $region35: #{tpu_custom_call.1} parent=31 // pred_region
          %p193 = scmp.lt.s32.totalorder %s15, 1
          %s194 = scalar_select %p193, %s15, 1
          %s195 = smul.addr %s194, 2
          %s196 = smul.addr %s195, 4
          %s197 = scalar_lea.vmem %s0, %s196
        $region36: #{tpu_custom_call.1} parent=31 // pred_fallthru
          _
      $region32: #{tpu_custom_call.1} parent=5 // pred_fallthru
        _
      %p198 = scmp.le.s32.totalorder 1, %s15
      %p199 = scmp.lt.s32.totalorder %s15, 3
      %p200 = pnand %p198, %p199
      %p201 = pneg %p200
      // Predicated region
      $region37: #{tpu_custom_call.1} parent=5 // pred_check
        _
      $region38: #{tpu_custom_call.1} parent=5 // pred_check_branch
        %203 = sbr.rel (%p200) target = $region40
      $region39: #{tpu_custom_call.1} parent=5 // pred_region
        %s204 = ssub.s32 %s15, 1
        // Predicated region
        $region41: #{tpu_custom_call.1} parent=39 // pred_check
          %p205 = pneg %p62
        $region42: #{tpu_custom_call.1} parent=39 // pred_check_branch
          %207 = sbr.rel (%p205) target = $region44
        $region43: #{tpu_custom_call.1} parent=39 // pred_region
          %208 = dma.done [#allocation4], 128
        $region44: #{tpu_custom_call.1} parent=39 // pred_fallthru
          _
        %p209 = scmp.lt.s32.totalorder %s20, 1
        %s210 = scalar_select %p209, %s20, 1
        %s211 = smul.addr %s210, 2
        %s212 = smul.addr %s211, 4
        %s213 = scalar_lea.vmem %s0, %s212
        %p214 = pneg %p41
        %p215 = pneg %p38
        %p216 = pneg %p62
        %p217 = pneg %p59
        %p218 = pneg %p83
        %p219 = pneg %p80
        %p220 = pneg %p104
        %p221 = pneg %p101
        %p222 = pneg %p125
        %p223 = pneg %p122
        %p224 = pneg %p151
        %p225 = pneg %p148
        %s226 = sand.u32 %s138, 1
        %s227 = scalar_lea.sflag [#allocation5], %s226
        %s228 = sand.u32 %s138, 1
        %s229 = smul.addr %s228, 8
        %s230 = scalar_lea.vmem [#allocation6], %s229
        %p231 = scmp.lt.s32.totalorder %s20, 1
        %s232 = scalar_select %p231, %s20, 1
        %s233 = smul.addr %s232, 2
        %s234 = smul.addr %s233, 4
        %s235 = scalar_lea.vmem %s0, %s234
        %v236 = vlaneseq
        %v237 = vand.u32 %v236, 127
        %v238 = vadd.s32 %v237, 128
        %v239 = vcvt.s32.f32 %v237
        %v240 = vcvt.s32.f32 %v238
        %v241 = vrcp.pop 256.0
        %v242 = vmul.f32 %v239, %v241
        %v243 = vmul.f32 %v240, %v241
        %v244 = vfloor.f32 %v242
        %v245 = vfloor.f32 %v243
        %v246 = vmul.f32 %v244, 256.0
        %v247 = vmul.f32 %v245, 256.0
        %v248 = vsub.f32 %v239, %v246
        %v249 = vsub.f32 %v240, %v247
        %v250 = vrcp.pop 16.0
        %v251 = vmul.f32 %v248, %v250
        %v252 = vmul.f32 %v249, %v250
        %v253 = vfloor.f32 %v251
        %v254 = vfloor.f32 %v252
        %v255 = vmul.f32 %v253, 16.0
        %v256 = vmul.f32 %v254, 16.0
        %v257 = vsub.f32 %v248, %v255
        %v258 = vsub.f32 %v249, %v256
        %vm259 = vcmp.ge.f32.partialorder %v253, 1.0
        %vm260 = vcmp.ge.f32.partialorder %v254, 1.0
        %vm261 = vcmp.ge.f32.partialorder %v257, 1.0
        %vm262 = vcmp.ge.f32.partialorder %v258, 1.0
        %vm263 = vmand %vm259, %vm261
        %vm264 = vmand %vm260, %vm262
        %vm265 = vcmp.le.f32.partialorder %v257, 14.0
        %vm266 = vcmp.le.f32.partialorder %v258, 14.0
        %vm267 = vmand %vm259, %vm265
        %vm268 = vmand %vm260, %vm266
        %vm269 = vcmp.le.f32.partialorder %v253, 14.0
        %vm270 = vcmp.le.f32.partialorder %v254, 14.0
        %vm271 = vmand %vm269, %vm261
        %vm272 = vmand %vm270, %vm262
        %vm273 = vmand %vm269, %vm265
        %vm274 = vmand %vm270, %vm266
        %v275 = vld [vmem:[%s235] sm:$0xff]
        %v277 = vcombine.high %v275, %v275
        %vm279 = vcmask 1043456
        %v280 = vsel %vm279, %v275, 0.0
        %v281 = vsel %vm279, %v277, 0.0
        %282 = vrot.lane.b32.xlu0 %v280, 17
        %v283 = vpop.permute.xlu0 %282
        %284 = vrot.lane.b32.xlu0 %v281, 17
        %v285 = vpop.permute.xlu0 %284
        %vm286 = vcmp.lt.s32.totalorder %v237, 17
        %v287 = vsel %vm286, %v283, %v285
        %v288 = vsel %vm286, %v285, %v283
        %v289 = vsel %vm263, 1, 0
        %v290 = vsel %vm264, 1, 0
        %vm291 = vcmp.eq.s32.totalorder %v289, 1
        %vm292 = vcmp.eq.s32.totalorder %v290, 1
        %v293 = vsel %vm291, %v288, 0.0
        %v294 = vsel %vm292, %v287, 0.0
        %295 = vst [vmem:[#allocation2] sm:$0xff] %v293
        %296 = vst [vmem:[#allocation2 + $0x8] sm:$0xff] %v294
        %297 = vrot.lane.b32.xlu0 %v280, 16
        %v298 = vpop.permute.xlu0 %297
        %299 = vrot.lane.b32.xlu0 %v281, 16
        %v300 = vpop.permute.xlu0 %299
        %vm301 = vcmp.lt.s32.totalorder %v237, 16
        %v302 = vsel %vm301, %v298, %v300
        %v303 = vsel %vm301, %v300, %v298
        %v304 = vsel %vm259, 1, 0
        %v305 = vsel %vm260, 1, 0
        %vm306 = vcmp.eq.s32.totalorder %v304, 1
        %vm307 = vcmp.eq.s32.totalorder %v305, 1
        %v308 = vsel %vm306, %v303, 0.0
        %v309 = vsel %vm307, %v302, 0.0
        %310 = vst [vmem:[#allocation2 + $0x10] sm:$0xff] %v308
        %311 = vst [vmem:[#allocation2 + $0x18] sm:$0xff] %v309
        %312 = vrot.lane.b32.xlu0 %v280, 15
        %v313 = vpop.permute.xlu0 %312
        %314 = vrot.lane.b32.xlu0 %v281, 15
        %v315 = vpop.permute.xlu0 %314
        %vm316 = vcmp.lt.s32.totalorder %v237, 15
        %v317 = vsel %vm316, %v313, %v315
        %v318 = vsel %vm316, %v315, %v313
        %v319 = vsel %vm267, 1, 0
        %v320 = vsel %vm268, 1, 0
        %vm321 = vcmp.eq.s32.totalorder %v319, 1
        %vm322 = vcmp.eq.s32.totalorder %v320, 1
        %v323 = vsel %vm321, %v318, 0.0
        %v324 = vsel %vm322, %v317, 0.0
        %325 = vst [vmem:[#allocation2 + $0x20] sm:$0xff] %v323
        %326 = vst [vmem:[#allocation2 + $0x28] sm:$0xff] %v324
        %327 = vrot.lane.b32.xlu0 %v280, 1
        %v328 = vpop.permute.xlu0 %327
        %329 = vrot.lane.b32.xlu0 %v281, 1
        %v330 = vpop.permute.xlu0 %329
        %vm331 = vcmp.lt.s32.totalorder %v237, 1
        %v332 = vsel %vm331, %v328, %v330
        %v333 = vsel %vm331, %v330, %v328
        %v334 = vsel %vm261, 1, 0
        %v335 = vsel %vm262, 1, 0
        %vm336 = vcmp.eq.s32.totalorder %v334, 1
        %vm337 = vcmp.eq.s32.totalorder %v335, 1
        %v338 = vsel %vm336, %v333, 0.0
        %v339 = vsel %vm337, %v332, 0.0
        %340 = vst [vmem:[#allocation2 + $0x30] sm:$0xff] %v338
        %341 = vst [vmem:[#allocation2 + $0x38] sm:$0xff] %v339
        %342 = vst [vmem:[#allocation2 + $0x40] sm:$0xff] %v280
        %343 = vst [vmem:[#allocation2 + $0x48] sm:$0xff] %v281
        %344 = vrot.lane.b32.xlu0 %v280, 127
        %v345 = vpop.permute.xlu0 %344
        %346 = vrot.lane.b32.xlu0 %v281, 127
        %v347 = vpop.permute.xlu0 %346
        %vm348 = vcmp.lt.s32.totalorder %v237, 127
        %v349 = vsel %vm348, %v345, %v347
        %v350 = vsel %vm348, %v347, %v345
        %v351 = vsel %vm265, 1, 0
        %v352 = vsel %vm266, 1, 0
        %vm353 = vcmp.eq.s32.totalorder %v351, 1
        %vm354 = vcmp.eq.s32.totalorder %v352, 1
        %v355 = vsel %vm353, %v349, 0.0
        %v356 = vsel %vm354, %v350, 0.0
        %357 = vst [vmem:[#allocation2 + $0x50] sm:$0xff] %v355
        %358 = vst [vmem:[#allocation2 + $0x58] sm:$0xff] %v356
        %359 = vrot.lane.b32.xlu0 %v280, 113
        %v360 = vpop.permute.xlu0 %359
        %361 = vrot.lane.b32.xlu0 %v281, 113
        %v362 = vpop.permute.xlu0 %361
        %vm363 = vcmp.lt.s32.totalorder %v237, 113
        %v364 = vsel %vm363, %v360, %v362
        %v365 = vsel %vm363, %v362, %v360
        %v366 = vsel %vm271, 1, 0
        %v367 = vsel %vm272, 1, 0
        %vm368 = vcmp.eq.s32.totalorder %v366, 1
        %vm369 = vcmp.eq.s32.totalorder %v367, 1
        %v370 = vsel %vm368, %v364, 0.0
        %v371 = vsel %vm369, %v365, 0.0
        %372 = vst [vmem:[#allocation2 + $0x60] sm:$0xff] %v370
        %373 = vst [vmem:[#allocation2 + $0x68] sm:$0xff] %v371
        %374 = vrot.lane.b32.xlu0 %v280, 112
        %v375 = vpop.permute.xlu0 %374
        %376 = vrot.lane.b32.xlu0 %v281, 112
        %v377 = vpop.permute.xlu0 %376
        %vm378 = vcmp.lt.s32.totalorder %v237, 112
        %v379 = vsel %vm378, %v375, %v377
        %v380 = vsel %vm378, %v377, %v375
        %v381 = vsel %vm269, 1, 0
        %v382 = vsel %vm270, 1, 0
        %vm383 = vcmp.eq.s32.totalorder %v381, 1
        %vm384 = vcmp.eq.s32.totalorder %v382, 1
        %v385 = vsel %vm383, %v379, 0.0
        %v386 = vsel %vm384, %v380, 0.0
        %387 = vst [vmem:[#allocation2 + $0x70] sm:$0xff] %v385
        %388 = vst [vmem:[#allocation2 + $0x78] sm:$0xff] %v386
        %389 = vrot.lane.b32.xlu0 %v280, 111
        %v390 = vpop.permute.xlu0 %389
        %391 = vrot.lane.b32.xlu0 %v281, 111
        %v392 = vpop.permute.xlu0 %391
        %vm393 = vcmp.lt.s32.totalorder %v237, 111
        %v394 = vsel %vm393, %v390, %v392
        %v395 = vsel %vm393, %v392, %v390
        %v396 = vsel %vm273, 1, 0
        %v397 = vsel %vm274, 1, 0
        %vm398 = vcmp.eq.s32.totalorder %v396, 1
        %vm399 = vcmp.eq.s32.totalorder %v397, 1
        %v400 = vsel %vm398, %v394, 0.0
        %v401 = vsel %vm399, %v395, 0.0
        %402 = vst [vmem:[#allocation2 + $0x80] sm:$0xff] %v400
        %403 = vst [vmem:[#allocation2 + $0x88] sm:$0xff] %v401
        %v404 = vld [vmem:[#allocation3] sm:$0xff]
        %v405 = vld [vmem:[#allocation2] sm:$0xff]
        %v406 = vld [vmem:[#allocation2 + $0x8] sm:$0xff]
        %v407 = vld [vmem:[#allocation2 + $0x10] sm:$0xff]
        %v408 = vld [vmem:[#allocation2 + $0x18] sm:$0xff]
        %v409 = vld [vmem:[#allocation2 + $0x20] sm:$0xff]
        %v410 = vld [vmem:[#allocation2 + $0x28] sm:$0xff]
        %v411 = vld [vmem:[#allocation2 + $0x30] sm:$0xff]
        %v412 = vld [vmem:[#allocation2 + $0x38] sm:$0xff]
        %v413 = vld [vmem:[#allocation2 + $0x40] sm:$0xff]
        %v414 = vld [vmem:[#allocation2 + $0x48] sm:$0xff]
        %v415 = vld [vmem:[#allocation2 + $0x50] sm:$0xff]
        %v416 = vld [vmem:[#allocation2 + $0x58] sm:$0xff]
        %v417 = vld [vmem:[#allocation2 + $0x60] sm:$0xff]
        %v418 = vld [vmem:[#allocation2 + $0x68] sm:$0xff]
        %v419 = vld [vmem:[#allocation2 + $0x70] sm:$0xff]
        %v420 = vld [vmem:[#allocation2 + $0x78] sm:$0xff]
        %v421 = vld [vmem:[#allocation2 + $0x80] sm:$0xff]
        %v422 = vld [vmem:[#allocation2 + $0x88] sm:$0xff]
        %v423 = vld [vmem:[%s2] sm:$0xff]
        %425 = vset.pattern.permute.xlu0 0
        %426 = vperm.xlu0 %425, %v423
        %v427 = vpop.permute.xlu0 %426
        %vm429 = vcmask 588800
        %v431 = vsel %vm429, %v404, 0
        %433 = vmatprep.subr.mxu0 %v406
        %434 = vmatpush1.msra.mxu0 %v405
        %435 = vmatprep.subr.mxu0 %v408
        %436 = vmatpush1.msra.mxu0 %v407
        %437 = vmatprep.subr.mxu0 %v410
        %438 = vmatpush1.msra.mxu0 %v409
        %439 = vmatprep.subr.mxu0 %v412
        %440 = vmatpush1.msra.mxu0 %v411
        %441 = vmatprep.subr.mxu0 %v414
        %442 = vmatpush1.msra.mxu0 %v413
        %443 = vmatprep.subr.mxu0 %v416
        %444 = vmatpush1.msra.mxu0 %v415
        %445 = vmatprep.subr.mxu0 %v418
        %446 = vmatpush1.msra.mxu0 %v417
        %447 = vmatprep.subr.mxu0 %v420
        %448 = vmatpush1.msra.mxu0 %v419
        %449 = vmatprep.subr.mxu0 %v422
        %450 = vmatpush1.msra.mxu0 %v421
        %451 = vmatprep.subr.mxu0 0.0
        %452 = vmatpush1.msra.mxu0 0.0
        %453 = vmatprep.subr.mxu0 0.0
        %454 = vmatpush1.msra.mxu0 0.0
        %455 = vmatprep.subr.mxu0 0.0
        %456 = vmatpush1.msra.mxu0 0.0
        %457 = vmatprep.subr.mxu0 0.0
        %458 = vmatpush1.msra.mxu0 0.0
        %459 = vmatprep.subr.mxu0 0.0
        %460 = vmatpush1.msra.mxu0 0.0
        %461 = vmatprep.subr.mxu0 0.0
        %462 = vmatpush1.msra.mxu0 0.0
        %463 = vmatprep.subr.mxu0 0.0
        %464 = vmatpush1.msra.mxu0 0.0
        %465 = vmatprep.subr.mxu0 0.0
        %466 = vmatpush1.msra.mxu0 0.0
        %467 = vmatprep.subr.mxu0 0.0
        %468 = vmatpush1.msra.mxu0 0.0
        %469 = vmatprep.subr.mxu0 0.0
        %470 = vmatpush1.msra.mxu0 0.0
        %471 = vmatprep.subr.mxu0 0.0
        %472 = vmatpush1.msra.mxu0 0.0
        %473 = vmatprep.subr.mxu0 0.0
        %474 = vmatpush1.msra.mxu0 0.0
        %475 = vmatprep.subr.mxu0 0.0
        %476 = vmatpush1.msra.mxu0 0.0
        %477 = vmatprep.subr.mxu0 0.0
        %478 = vmatpush1.msra.mxu0 0.0
        %479 = vmatprep.subr.mxu0 0.0
        %480 = vmatpush1.msra.mxu0 0.0
        %481 = vmatprep.subr.mxu0 0.0
        %482 = vmatpush1.msra.mxu0 0.0
        %483 = vmatprep.subr.mxu0 0.0
        %484 = vmatpush1.msra.mxu0 0.0
        %485 = vmatprep.subr.mxu0 0.0
        %486 = vmatpush1.msra.mxu0 0.0
        %487 = vmatprep.subr.mxu0 0.0
        %488 = vmatpush1.msra.mxu0 0.0
        %489 = vmatprep.subr.mxu0 0.0
        %490 = vmatpush1.msra.mxu0 0.0
        %491 = vmatprep.subr.mxu0 0.0
        %492 = vmatpush1.msra.mxu0 0.0
        %493 = vmatprep.subr.mxu0 0.0
        %494 = vmatpush1.msra.mxu0 0.0
        %495 = vmatprep.subr.mxu0 0.0
        %496 = vmatpush1.msra.mxu0 0.0
        %497 = vmatprep.mubr.f32.mxu0 0.0
        %498 = vmatmul.mubr.f32.gmra.mrb[0].mxu0 %v431
        %v499 = vpop.f32.mrb[0].mxu0
        %v500 = vadd.f32 %v427, %v499
        %v501 = vpop.f32.mrb[0].mxu0
        %v502 = vadd.f32 %v427, %v501
        %503 = vdwg.mxu0
        %v504 = vadd.f32 %v500, %v502
        %505 = vadd.xlane.f32.xlu0 %v504
        %v506 = vpop.xlane.xlu0 %505
        %v507 = vmul.f32 %v506, %v241
        %v508 = vsub.f32 %v500, %v507
        %v509 = vsub.f32 %v502, %v507
        %v510 = vmul.f32 %v508, %v508
        %v511 = vmul.f32 %v509, %v509
        %v512 = vadd.f32 %v510, %v511
        %513 = vadd.xlane.f32.xlu0 %v512
        %v514 = vpop.xlane.xlu0 %513
        %v515 = vmul.f32 %v514, %v241
        %v516 = vadd.f32 %v515, 1e-05
        %v517 = vrsqrt.pop %v516
        %v518 = vmul.f32 %v508, %v517
        %v519 = vmul.f32 %v509, %v517
        %v520 = vmul.f32 %v518, 0.5
        %v521 = vmul.f32 %v519, 0.5
        %v522 = vmul.f32 %v518, 0.70710677
        %v523 = vmul.f32 %v519, 0.70710677
        %v524 = verf.f32.pop %v522
        %v525 = verf.f32.pop %v523
        %v526 = vadd.f32 %v524, 1.0
        %v527 = vadd.f32 %v525, 1.0
        %v528 = vmul.f32 %v520, %v526
        %v529 = vmul.f32 %v521, %v527
        %530 = vrot.lane.b32.xlu0 %v528, 17
        %v531 = vpop.permute.xlu0 %530
        %532 = vrot.lane.b32.xlu0 %v529, 17
        %v533 = vpop.permute.xlu0 %532
        %v534 = vsel %vm286, %v531, %v533
        %v535 = vsel %vm286, %v533, %v531
        %v536 = vsel %vm291, %v535, 0.0
        %v537 = vsel %vm292, %v534, 0.0
        %538 = vst [vmem:[#allocation2] sm:$0xff] %v536
        %539 = vst [vmem:[#allocation2 + $0x8] sm:$0xff] %v537
        %540 = vrot.lane.b32.xlu0 %v528, 16
        %v541 = vpop.permute.xlu0 %540
        %542 = vrot.lane.b32.xlu0 %v529, 16
        %v543 = vpop.permute.xlu0 %542
        %v544 = vsel %vm301, %v541, %v543
        %v545 = vsel %vm301, %v543, %v541
        %v546 = vsel %vm306, %v545, 0.0
        %v547 = vsel %vm307, %v544, 0.0
        %548 = vst [vmem:[#allocation2 + $0x10] sm:$0xff] %v546
        %549 = vst [vmem:[#allocation2 + $0x18] sm:$0xff] %v547
        %550 = vrot.lane.b32.xlu0 %v528, 15
        %v551 = vpop.permute.xlu0 %550
        %552 = vrot.lane.b32.xlu0 %v529, 15
        %v553 = vpop.permute.xlu0 %552
        %v554 = vsel %vm316, %v551, %v553
        %v555 = vsel %vm316, %v553, %v551
        %v556 = vsel %vm321, %v555, 0.0
        %v557 = vsel %vm322, %v554, 0.0
        %558 = vst [vmem:[#allocation2 + $0x20] sm:$0xff] %v556
        %559 = vst [vmem:[#allocation2 + $0x28] sm:$0xff] %v557
        %560 = vrot.lane.b32.xlu0 %v528, 1
        %v561 = vpop.permute.xlu0 %560
        %562 = vrot.lane.b32.xlu0 %v529, 1
        %v563 = vpop.permute.xlu0 %562
        %v564 = vsel %vm331, %v561, %v563
        %v565 = vsel %vm331, %v563, %v561
        %v566 = vsel %vm336, %v565, 0.0
        %v567 = vsel %vm337, %v564, 0.0
        %568 = vst [vmem:[#allocation2 + $0x30] sm:$0xff] %v566
        %569 = vst [vmem:[#allocation2 + $0x38] sm:$0xff] %v567
        %570 = vst [vmem:[#allocation2 + $0x40] sm:$0xff] %v528
        %571 = vst [vmem:[#allocation2 + $0x48] sm:$0xff] %v529
        %572 = vrot.lane.b32.xlu0 %v528, 127
        %v573 = vpop.permute.xlu0 %572
        %574 = vrot.lane.b32.xlu0 %v529, 127
        %v575 = vpop.permute.xlu0 %574
        %v576 = vsel %vm348, %v573, %v575
        %v577 = vsel %vm348, %v575, %v573
        %v578 = vsel %vm353, %v576, 0.0
        %v579 = vsel %vm354, %v577, 0.0
        %580 = vst [vmem:[#allocation2 + $0x50] sm:$0xff] %v578
        %581 = vst [vmem:[#allocation2 + $0x58] sm:$0xff] %v579
        %582 = vrot.lane.b32.xlu0 %v528, 113
        %v583 = vpop.permute.xlu0 %582
        %584 = vrot.lane.b32.xlu0 %v529, 113
        %v585 = vpop.permute.xlu0 %584
        %v586 = vsel %vm363, %v583, %v585
        %v587 = vsel %vm363, %v585, %v583
        %v588 = vsel %vm368, %v586, 0.0
        %v589 = vsel %vm369, %v587, 0.0
        %590 = vst [vmem:[#allocation2 + $0x60] sm:$0xff] %v588
        %591 = vst [vmem:[#allocation2 + $0x68] sm:$0xff] %v589
        %592 = vrot.lane.b32.xlu0 %v528, 112
        %v593 = vpop.permute.xlu0 %592
        %594 = vrot.lane.b32.xlu0 %v529, 112
        %v595 = vpop.permute.xlu0 %594
        %v596 = vsel %vm378, %v593, %v595
        %v597 = vsel %vm378, %v595, %v593
        %v598 = vsel %vm383, %v596, 0.0
        %v599 = vsel %vm384, %v597, 0.0
        %600 = vst [vmem:[#allocation2 + $0x70] sm:$0xff] %v598
        %601 = vst [vmem:[#allocation2 + $0x78] sm:$0xff] %v599
        %602 = vrot.lane.b32.xlu0 %v528, 111
        %v603 = vpop.permute.xlu0 %602
        %604 = vrot.lane.b32.xlu0 %v529, 111
        %v605 = vpop.permute.xlu0 %604
        %v606 = vsel %vm393, %v603, %v605
        %v607 = vsel %vm393, %v605, %v603
        %v608 = vsel %vm398, %v606, 0.0
        %v609 = vsel %vm399, %v607, 0.0
        %610 = vst [vmem:[#allocation2 + $0x80] sm:$0xff] %v608
        %611 = vst [vmem:[#allocation2 + $0x88] sm:$0xff] %v609
        %v612 = vld [vmem:[%s3] sm:$0xff]
        %v613 = vld [vmem:[#allocation2] sm:$0xff]
        %v614 = vld [vmem:[#allocation2 + $0x8] sm:$0xff]
        %v615 = vld [vmem:[#allocation2 + $0x10] sm:$0xff]
        %v616 = vld [vmem:[#allocation2 + $0x18] sm:$0xff]
        %v617 = vld [vmem:[#allocation2 + $0x20] sm:$0xff]
        %v618 = vld [vmem:[#allocation2 + $0x28] sm:$0xff]
        %v619 = vld [vmem:[#allocation2 + $0x30] sm:$0xff]
        %v620 = vld [vmem:[#allocation2 + $0x38] sm:$0xff]
        %v621 = vld [vmem:[#allocation2 + $0x40] sm:$0xff]
        %v622 = vld [vmem:[#allocation2 + $0x48] sm:$0xff]
        %v623 = vld [vmem:[#allocation2 + $0x50] sm:$0xff]
        %v624 = vld [vmem:[#allocation2 + $0x58] sm:$0xff]
        %v625 = vld [vmem:[#allocation2 + $0x60] sm:$0xff]
        %v626 = vld [vmem:[#allocation2 + $0x68] sm:$0xff]
        %v627 = vld [vmem:[#allocation2 + $0x70] sm:$0xff]
        %v628 = vld [vmem:[#allocation2 + $0x78] sm:$0xff]
        %v629 = vld [vmem:[#allocation2 + $0x80] sm:$0xff]
        %v630 = vld [vmem:[#allocation2 + $0x88] sm:$0xff]
        %v631 = vld [vmem:[%s4] sm:$0xff]
        %633 = vset.pattern.permute.xlu0 0
        %634 = vperm.xlu0 %633, %v631
        %v635 = vpop.permute.xlu0 %634
        %v638 = vsel %vm429, %v612, 0
        %640 = vmatprep.subr.mxu0 %v614
        %641 = vmatpush1.msra.mxu0 %v613
        %642 = vmatprep.subr.mxu0 %v616
        %643 = vmatpush1.msra.mxu0 %v615
        %644 = vmatprep.subr.mxu0 %v618
        %645 = vmatpush1.msra.mxu0 %v617
        %646 = vmatprep.subr.mxu0 %v620
        %647 = vmatpush1.msra.mxu0 %v619
        %648 = vmatprep.subr.mxu0 %v622
        %649 = vmatpush1.msra.mxu0 %v621
        %650 = vmatprep.subr.mxu0 %v624
        %651 = vmatpush1.msra.mxu0 %v623
        %652 = vmatprep.subr.mxu0 %v626
        %653 = vmatpush1.msra.mxu0 %v625
        %654 = vmatprep.subr.mxu0 %v628
        %655 = vmatpush1.msra.mxu0 %v627
        %656 = vmatprep.subr.mxu0 %v630
        %657 = vmatpush1.msra.mxu0 %v629
        %658 = vmatprep.subr.mxu0 0.0
        %659 = vmatpush1.msra.mxu0 0.0
        %660 = vmatprep.subr.mxu0 0.0
        %661 = vmatpush1.msra.mxu0 0.0
        %662 = vmatprep.subr.mxu0 0.0
        %663 = vmatpush1.msra.mxu0 0.0
        %664 = vmatprep.subr.mxu0 0.0
        %665 = vmatpush1.msra.mxu0 0.0
        %666 = vmatprep.subr.mxu0 0.0
        %667 = vmatpush1.msra.mxu0 0.0
        %668 = vmatprep.subr.mxu0 0.0
        %669 = vmatpush1.msra.mxu0 0.0
        %670 = vmatprep.subr.mxu0 0.0
        %671 = vmatpush1.msra.mxu0 0.0
        %672 = vmatprep.subr.mxu0 0.0
        %673 = vmatpush1.msra.mxu0 0.0
        %674 = vmatprep.subr.mxu0 0.0
        %675 = vmatpush1.msra.mxu0 0.0
        %676 = vmatprep.subr.mxu0 0.0
        %677 = vmatpush1.msra.mxu0 0.0
        %678 = vmatprep.subr.mxu0 0.0
        %679 = vmatpush1.msra.mxu0 0.0
        %680 = vmatprep.subr.mxu0 0.0
        %681 = vmatpush1.msra.mxu0 0.0
        %682 = vmatprep.subr.mxu0 0.0
        %683 = vmatpush1.msra.mxu0 0.0
        %684 = vmatprep.subr.mxu0 0.0
        %685 = vmatpush1.msra.mxu0 0.0
        %686 = vmatprep.subr.mxu0 0.0
        %687 = vmatpush1.msra.mxu0 0.0
        %688 = vmatprep.subr.mxu0 0.0
        %689 = vmatpush1.msra.mxu0 0.0
        %690 = vmatprep.subr.mxu0 0.0
        %691 = vmatpush1.msra.mxu0 0.0
        %692 = vmatprep.subr.mxu0 0.0
        %693 = vmatpush1.msra.mxu0 0.0
        %694 = vmatprep.subr.mxu0 0.0
        %695 = vmatpush1.msra.mxu0 0.0
        %696 = vmatprep.subr.mxu0 0.0
        %697 = vmatpush1.msra.mxu0 0.0
        %698 = vmatprep.subr.mxu0 0.0
        %699 = vmatpush1.msra.mxu0 0.0
        %700 = vmatprep.subr.mxu0 0.0
        %701 = vmatpush1.msra.mxu0 0.0
        %702 = vmatprep.subr.mxu0 0.0
        %703 = vmatpush1.msra.mxu0 0.0
        %704 = vmatprep.mubr.f32.mxu0 0.0
        %705 = vmatmul.mubr.f32.gmra.mrb[0].mxu0 %v638
        %v706 = vpop.f32.mrb[0].mxu0
        %v707 = vadd.f32 %v635, %v706
        %v708 = vpop.f32.mrb[0].mxu0
        %v709 = vadd.f32 %v635, %v708
        %710 = vdwg.mxu0
        %v711 = vadd.f32 %v707, %v709
        %712 = vadd.xlane.f32.xlu0 %v711
        %v713 = vpop.xlane.xlu0 %712
        %v714 = vmul.f32 %v713, %v241
        %v715 = vsub.f32 %v707, %v714
        %v716 = vsub.f32 %v709, %v714
        %v717 = vmul.f32 %v715, %v715
        %v718 = vmul.f32 %v716, %v716
        %v719 = vadd.f32 %v717, %v718
        %720 = vadd.xlane.f32.xlu0 %v719
        %v721 = vpop.xlane.xlu0 %720
        %v722 = vmul.f32 %v721, %v241
        %v723 = vadd.f32 %v722, 1e-05
        %v724 = vrsqrt.pop %v723
        %v725 = vmul.f32 %v715, %v724
        %v726 = vmul.f32 %v716, %v724
        %v727 = vmul.f32 %v725, 0.5
        %v728 = vmul.f32 %v726, 0.5
        %v729 = vmul.f32 %v725, 0.70710677
        %v730 = vmul.f32 %v726, 0.70710677
        %v731 = verf.f32.pop %v729
        %v732 = verf.f32.pop %v730
        %v733 = vadd.f32 %v731, 1.0
        %v734 = vadd.f32 %v732, 1.0
        %v735 = vmul.f32 %v727, %v733
        %v736 = vmul.f32 %v728, %v734
        %v737 = vld [vmem:[%s235] sm:$0xff]
        %v740 = vcombine.low %v735, %v736
        %v742 = vadd.f32 %v737, %v740
        %v743 = vrcp.pop 1.414
        %v744 = vmul.f32 %v742, %v743
        %745 = vst [vmem:[%s230] sm:$0xff] %v744
        %s746 = sand.u32 %s138, 1
        %s747 = scalar_lea.sflag [#allocation5], %s746
        %s748 = sand.u32 %s138, 1
        %s749 = smul.addr %s748, 8
        %s750 = scalar_lea.vmem [#allocation6], %s749
        // Predicated region
        $region45: #{tpu_custom_call.1} parent=39 // pred_check
          %p751 = pneg %p148
        $region46: #{tpu_custom_call.1} parent=39 // pred_check_branch
          %753 = sbr.rel (%p751) target = $region48
        $region47: #{tpu_custom_call.1} parent=39 // pred_region
          %s755 = ssub.s32 128, 128
          %756 = vsyncadd %s747, %s755
          %s757 = smul.addr %s20, 2
          %s758 = smul.addr %s757, 64
          %s759 = scalar_lea.hbm %s5, %s758
          %s761 = sshll.u32 %s750, 4
          %s762 = int_to_ptr.vmem [resolvable:$true] %s761
          %764 = dma.vmem_to_hbm [thread:$0]  %s762, 128, %s759, %s747
        $region48: #{tpu_custom_call.1} parent=39 // pred_fallthru
          _
      $region40: #{tpu_custom_call.1} parent=5 // pred_fallthru
        _
      %p765 = scmp.le.s32.totalorder 2, %s15
      // Predicated region
      $region49: #{tpu_custom_call.1} parent=5 // pred_check
        %p766 = pneg %p765
      $region50: #{tpu_custom_call.1} parent=5 // pred_check_branch
        %768 = sbr.rel (%p766) target = $region52
      $region51: #{tpu_custom_call.1} parent=5 // pred_region
        %s769 = ssub.s32 %s15, 2
        // Predicated region
        $region53: #{tpu_custom_call.1} parent=51 // pred_check
          %p770 = pneg %p154
        $region54: #{tpu_custom_call.1} parent=51 // pred_check_branch
          %772 = sbr.rel (%p770) target = $region56
        $region55: #{tpu_custom_call.1} parent=51 // pred_region
          %s773 = sand.u32 %s139, 1
          %s774 = scalar_lea.sflag [#allocation5], %s773
          %s775 = sand.u32 %s139, 1
          %s776 = smul.addr %s775, 8
          %s777 = scalar_lea.vmem [#allocation6], %s776
          %778 = dma.done %s774, 128
        $region56: #{tpu_custom_call.1} parent=51 // pred_fallthru
          _
      $region52: #{tpu_custom_call.1} parent=5 // pred_fallthru
        _
    $region6: #{tpu_custom_call.1} parent=1 // loop_footer
      %s19 = sadd.s32 1, %s15
    $region7: #{tpu_custom_call.1} parent=1 // loop_footer_branch
      %14 = sbr.rel target = $region3
    $region8: #{tpu_custom_call.1} parent=1 // loop_exit
      _
    %779 = vsyncpa [#allocation4], 1
    %s780 = scalar_lea.sflag [#allocation4], 1
    %781 = vsyncpa %s780, 1
    %782 = vsyncpa [#allocation5], 1
    %s783 = scalar_lea.sflag [#allocation5], 1
    %784 = vsyncpa %s783, 1

</llo_original>
